<compile_context>
chip_gen: v6e
topology: v6e:2x2x1
jax: 0.10.0
libtpu: 0.0.40
codegen_flags: <defaults>
</compile_context>

<pallas_src>
import jax
import jax.numpy as jnp
from jax.experimental import pallas as pl
from jax.experimental.pallas import tpu as pltpu


def _fusion_kernel(x_ref, w1_ref, b1_ref, w2_ref, b2_ref, w3_ref, b3_ref, o_ref):
    """One (Cin, T) pixel tile -> (Cout, T) tile; pixels live on the lane axis.

    x_ref : (Cin, T)    bf16  NCHW-native channel-major pixel tile
    wK    : (outK, inK) bf16  Conv2d(k=1) weights in PyTorch (out, in) layout
    bK    : (outK, 1)   f32
    o_ref : (Cout, T)   f32
    """
    h = jnp.dot(w1_ref[...], x_ref[...], preferred_element_type=jnp.float32)
    h = jnp.maximum(h + b1_ref[...], 0.0)                       # (512, T) f32
    h = jnp.dot(w2_ref[...], h.astype(jnp.bfloat16),
                preferred_element_type=jnp.float32)
    h = jnp.maximum(h + b2_ref[...], 0.0)                       # (256, T) f32
    h = jnp.dot(w3_ref[...], h.astype(jnp.bfloat16),
                preferred_element_type=jnp.float32)
    h = jnp.maximum(h + b3_ref[...], 0.0)                       # (Cout, T) f32
    o_ref[...] = h.astype(o_ref.dtype)


def late_code_fusion(x_nchw, params, *, tile_hw=2048):
    """x_nchw: (N, Cin, H, W) float32.  params: w1,b1,w2,b2,w3,b3 (see init_params)."""
    N, Cin, H, W = x_nchw.shape
    w1, b1 = params["w1"], params["b1"]   # (512, Cin),  (512, 1)
    w2, b2 = params["w2"], params["b2"]   # (256, 512),  (256, 1)
    w3, b3 = params["w3"], params["b3"]   # (Cout, 256), (Cout, 1)
    Cout = w3.shape[0]
    HW = H * W

    # Spatial tile: multiple of 128 lanes, no larger than the lane-padded extent.
    hw_ceil = ((HW + 127) // 128) * 128
    t = max(128, min((tile_hw // 128) * 128, hw_ceil))
    hw_pad = ((HW + t - 1) // t) * t

    x = x_nchw.reshape(N, Cin, HW)                 # NCHW-native, no transpose
    if hw_pad != HW:
        x = jnp.pad(x, ((0, 0), (0, 0), (0, hw_pad - HW)))
    x = x.astype(jnp.bfloat16)
    w1b = w1.astype(jnp.bfloat16)
    w2b = w2.astype(jnp.bfloat16)
    w3b = w3.astype(jnp.bfloat16)

    grid = (N, hw_pad // t)
    full = lambda n, i: (0, 0)  # weights/biases: same whole-array block every step

    out = pl.pallas_call(
        _fusion_kernel,
        out_shape=jax.ShapeDtypeStruct((N, Cout, hw_pad), jnp.float32),
        grid_spec=pltpu.PrefetchScalarGridSpec(
            num_scalar_prefetch=0,
            grid=grid,
            in_specs=[
                pl.BlockSpec((None, Cin, t), lambda n, i: (n, 0, i)),
                pl.BlockSpec(w1b.shape, full),
                pl.BlockSpec(b1.shape, full),
                pl.BlockSpec(w2b.shape, full),
                pl.BlockSpec(b2.shape, full),
                pl.BlockSpec(w3b.shape, full),
                pl.BlockSpec(b3.shape, full),
            ],
            out_specs=pl.BlockSpec((None, Cout, t), lambda n, i: (n, 0, i)),
        ),
        compiler_params=pltpu.CompilerParams(
            dimension_semantics=("parallel", "parallel"),
            vmem_limit_bytes=48 * 1024 * 1024,
        ),
    )(x, w1b, b1, w2b, b2, w3b, b3)

    # Drop spatial padding, restore (N, Cout, H, W).
    return out[:, :, :HW].reshape(N, Cout, H, W)


def init_params(key, in_channels, out_channels):
    """Matches PyTorch Conv2d(kernel_size=1) default init.  Weights stored (out, in)
    — the native Conv2d layout — so the kernel computes y = W @ x + b per pixel."""
    ks = jax.random.split(key, 6)

    def w(k, cout, cin):
        bound = 1.0 / jnp.sqrt(cin)
        return jax.random.uniform(k, (cout, cin), jnp.float32, -bound, bound)

    def b(k, cout, cin):
        bound = 1.0 / jnp.sqrt(cin)
        return jax.random.uniform(k, (cout, 1), jnp.float32, -bound, bound)

    return {
        "w1": w(ks[0], 512, in_channels),  "b1": b(ks[1], 512, in_channels),
        "w2": w(ks[2], 256, 512),          "b2": b(ks[3], 256, 512),
        "w3": w(ks[4], out_channels, 256), "b3": b(ks[5], out_channels, 256),
    }


def _reference(x_nchw, p):
    """Pure-JAX f32 reference of the 1x1-conv stack (matches the PyTorch module)."""
    N, Cin, H, W = x_nchw.shape
    x = x_nchw.reshape(N, Cin, H * W)
    h = jnp.maximum(jnp.einsum("oi,nis->nos", p["w1"], x) + p["b1"][None], 0.0)
    h = jnp.maximum(jnp.einsum("oi,nis->nos", p["w2"], h) + p["b2"][None], 0.0)
    h = jnp.maximum(jnp.einsum("oi,nis->nos", p["w3"], h) + p["b3"][None], 0.0)
    return h.reshape(N, -1, H, W)


if __name__ == "__main__":
    in_channels, out_channels = 4, 8
    N, H, W = 2, 16, 16

    key = jax.random.PRNGKey(0)
    kx, kp = jax.random.split(key)
    x = jax.random.normal(kx, (N, in_channels, H, W), jnp.float32)
    params = init_params(kp, in_channels, out_channels)

    out = late_code_fusion(x, params)
    out = jax.block_until_ready(out)

    ref = _reference(x, params)
    assert out.shape == (N, out_channels, H, W)
    # bf16 MXU operands with f32 accumulation -> relaxed tolerance vs. the f32 ref.
    assert jnp.allclose(out, ref, atol=5e-2, rtol=5e-2), (
        float(jnp.max(jnp.abs(out - ref))))
    print("KERNEL_OK")
</pallas_src>

<mosaic_0001>
module attributes {stable_mosaic.version = 11 : i64} {
  func.func @_fusion_kernel(%arg0: i32, %arg1: i32, %arg2: memref<1x4x256xbf16, #tpu.memory_space<vmem>>, %arg3: memref<512x4xbf16, #tpu.memory_space<vmem>>, %arg4: memref<512x1xf32, #tpu.memory_space<vmem>>, %arg5: memref<256x512xbf16, #tpu.memory_space<vmem>>, %arg6: memref<256x1xf32, #tpu.memory_space<vmem>>, %arg7: memref<8x256xbf16, #tpu.memory_space<vmem>>, %arg8: memref<8x1xf32, #tpu.memory_space<vmem>>, %arg9: memref<1x8x256xf32, #tpu.memory_space<vmem>>) attributes {dimension_semantics = [#tpu.dimension_semantics<parallel>, #tpu.dimension_semantics<parallel>], iteration_bounds = array<i64: 2, 1>, scalar_prefetch = 0 : i64, scratch_operands = 0 : i64, tpu.core_type = #tpu.core_type<tc>, window_params = [{transform_indices = @transform_0, window_bounds = array<i64: 1, 4, 256>}, {pipeline_mode = #tpu.pipeline_mode<synchronous>, transform_indices = @transform_1, window_bounds = array<i64: 512, 4>}, {pipeline_mode = #tpu.pipeline_mode<synchronous>, transform_indices = @transform_2, window_bounds = array<i64: 512, 1>}, {pipeline_mode = #tpu.pipeline_mode<synchronous>, transform_indices = @transform_3, window_bounds = array<i64: 256, 512>}, {pipeline_mode = #tpu.pipeline_mode<synchronous>, transform_indices = @transform_4, window_bounds = array<i64: 256, 1>}, {pipeline_mode = #tpu.pipeline_mode<synchronous>, transform_indices = @transform_5, window_bounds = array<i64: 8, 256>}, {pipeline_mode = #tpu.pipeline_mode<synchronous>, transform_indices = @transform_6, window_bounds = array<i64: 8, 1>}, {transform_indices = @transform_7, window_bounds = array<i64: 1, 8, 256>}]} {
    %c0 = arith.constant 0 : index
    %c0_0 = arith.constant 0 : index
    %0 = vector.load %arg3[%c0, %c0_0] : memref<512x4xbf16, #tpu.memory_space<vmem>>, vector<512x4xbf16>
    %c0_1 = arith.constant 0 : index
    %c0_2 = arith.constant 0 : index
    %c0_3 = arith.constant 0 : index
    %1 = vector.load %arg2[%c0_1, %c0_2, %c0_3] : memref<1x4x256xbf16, #tpu.memory_space<vmem>>, vector<1x4x256xbf16>
    %2 = vector.shape_cast %1 : vector<1x4x256xbf16> to vector<4x256xbf16>
    %cst = arith.constant dense<0.000000e+00> : vector<512x256xf32>
    %3 = tpu.matmul %0, %2, %cst {dimension_numbers = #tpu.dot_dimension_numbers<[1], [0], [0], [1], [0, 0, 1, 1], [], []>} : vector<512x4xbf16>, vector<4x256xbf16>, vector<512x256xf32> -> vector<512x256xf32>
    %c0_4 = arith.constant 0 : index
    %c0_5 = arith.constant 0 : index
    %4 = vector.load %arg4[%c0_4, %c0_5] : memref<512x1xf32, #tpu.memory_space<vmem>>, vector<512x1xf32>
    %5 = vector.broadcast %4 : vector<512x1xf32> to vector<512x256xf32>
    %6 = arith.addf %3, %5 : vector<512x256xf32>
    %cst_6 = arith.constant 0.000000e+00 : f32
    %7 = vector.broadcast %cst_6 : f32 to vector<512x256xf32>
    %8 = arith.maximumf %6, %7 : vector<512x256xf32>
    %c0_7 = arith.constant 0 : index
    %c0_8 = arith.constant 0 : index
    %9 = vector.load %arg5[%c0_7, %c0_8] : memref<256x512xbf16, #tpu.memory_space<vmem>>, vector<256x512xbf16>
    %10 = arith.truncf %8 : vector<512x256xf32> to vector<512x256xbf16>
    %cst_9 = arith.constant dense<0.000000e+00> : vector<256x256xf32>
    %11 = tpu.matmul %9, %10, %cst_9 {dimension_numbers = #tpu.dot_dimension_numbers<[1], [0], [0], [1], [0, 0, 1, 1], [], []>} : vector<256x512xbf16>, vector<512x256xbf16>, vector<256x256xf32> -> vector<256x256xf32>
    %c0_10 = arith.constant 0 : index
    %c0_11 = arith.constant 0 : index
    %12 = vector.load %arg6[%c0_10, %c0_11] : memref<256x1xf32, #tpu.memory_space<vmem>>, vector<256x1xf32>
    %13 = vector.broadcast %12 : vector<256x1xf32> to vector<256x256xf32>
    %14 = arith.addf %11, %13 : vector<256x256xf32>
    %cst_12 = arith.constant 0.000000e+00 : f32
    %15 = vector.broadcast %cst_12 : f32 to vector<256x256xf32>
    %16 = arith.maximumf %14, %15 : vector<256x256xf32>
    %c0_13 = arith.constant 0 : index
    %c0_14 = arith.constant 0 : index
    %17 = vector.load %arg7[%c0_13, %c0_14] : memref<8x256xbf16, #tpu.memory_space<vmem>>, vector<8x256xbf16>
    %18 = arith.truncf %16 : vector<256x256xf32> to vector<256x256xbf16>
    %cst_15 = arith.constant dense<0.000000e+00> : vector<8x256xf32>
    %19 = tpu.matmul %17, %18, %cst_15 {dimension_numbers = #tpu.dot_dimension_numbers<[1], [0], [0], [1], [0, 0, 1, 1], [], []>} : vector<8x256xbf16>, vector<256x256xbf16>, vector<8x256xf32> -> vector<8x256xf32>
    %c0_16 = arith.constant 0 : index
    %c0_17 = arith.constant 0 : index
    %20 = vector.load %arg8[%c0_16, %c0_17] : memref<8x1xf32, #tpu.memory_space<vmem>>, vector<8x1xf32>
    %21 = vector.broadcast %20 : vector<8x1xf32> to vector<8x256xf32>
    %22 = arith.addf %19, %21 : vector<8x256xf32>
    %cst_18 = arith.constant 0.000000e+00 : f32
    %23 = vector.broadcast %cst_18 : f32 to vector<8x256xf32>
    %24 = arith.maximumf %22, %23 : vector<8x256xf32>
    %c0_19 = arith.constant 0 : index
    %c0_20 = arith.constant 0 : index
    %c0_21 = arith.constant 0 : index
    %25 = vector.load %arg9[%c0_19, %c0_20, %c0_21] : memref<1x8x256xf32, #tpu.memory_space<vmem>>, vector<1x8x256xf32>
    %26 = vector.shape_cast %25 : vector<1x8x256xf32> to vector<8x256xf32>
    %27 = vector.shape_cast %24 : vector<8x256xf32> to vector<1x8x256xf32>
    tpu.vector_store %arg9[%c0_19, %c0_20, %c0_21], %27 {strides = array<i32>} : memref<1x8x256xf32, #tpu.memory_space<vmem>>, vector<1x8x256xf32>,
    return
  }
  func.func @transform_0(%arg0: i32, %arg1: i32) -> (i32, i32, i32) {
    %c0_i32 = arith.constant 0 : i32
    %c0_i32_0 = arith.constant 0 : i32
    return %arg0, %c0_i32, %arg1 : i32, i32, i32
  }
  func.func @transform_1(%arg0: i32, %arg1: i32) -> (i32, i32) {
    %c0_i32 = arith.constant 0 : i32
    %c0_i32_0 = arith.constant 0 : i32
    %c0_i32_1 = arith.constant 0 : i32
    return %c0_i32, %c0_i32_0 : i32, i32
  }
  func.func @transform_2(%arg0: i32, %arg1: i32) -> (i32, i32) {
    %c0_i32 = arith.constant 0 : i32
    %c0_i32_0 = arith.constant 0 : i32
    %c0_i32_1 = arith.constant 0 : i32
    return %c0_i32, %c0_i32_0 : i32, i32
  }
  func.func @transform_3(%arg0: i32, %arg1: i32) -> (i32, i32) {
    %c0_i32 = arith.constant 0 : i32
    %c0_i32_0 = arith.constant 0 : i32
    %c0_i32_1 = arith.constant 0 : i32
    return %c0_i32, %c0_i32_0 : i32, i32
  }
  func.func @transform_4(%arg0: i32, %arg1: i32) -> (i32, i32) {
    %c0_i32 = arith.constant 0 : i32
    %c0_i32_0 = arith.constant 0 : i32
    %c0_i32_1 = arith.constant 0 : i32
    return %c0_i32, %c0_i32_0 : i32, i32
  }
  func.func @transform_5(%arg0: i32, %arg1: i32) -> (i32, i32) {
    %c0_i32 = arith.constant 0 : i32
    %c0_i32_0 = arith.constant 0 : i32
    %c0_i32_1 = arith.constant 0 : i32
    return %c0_i32, %c0_i32_0 : i32, i32
  }
  func.func @transform_6(%arg0: i32, %arg1: i32) -> (i32, i32) {
    %c0_i32 = arith.constant 0 : i32
    %c0_i32_0 = arith.constant 0 : i32
    %c0_i32_1 = arith.constant 0 : i32
    return %c0_i32, %c0_i32_0 : i32, i32
  }
  func.func @transform_7(%arg0: i32, %arg1: i32) -> (i32, i32, i32) {
    %c0_i32 = arith.constant 0 : i32
    %c0_i32_0 = arith.constant 0 : i32
    return %arg0, %c0_i32, %arg1 : i32, i32, i32
  }
}

</mosaic_0001>

<llo_original>
// kernel: tpu_custom_call.1
$region0: #{tpu_custom_call.1}
  #allocation0 [shape = 'u32[]', space=smem, size = 0x4, offset = 0x4, fixed_abs, tag = 'smem constant byte address 0x4 - core index']
  #allocation1 [shape = 'u32[144,128]{1,0:T(1,128)}', space=vmem, size = 0x12000, scoped, tag = 'internal scratch']
  %s0 = inlined_call_operand.vmem [shape: bf16[2,4,256], index: 0, kind: input, shape index: {}]
  %s1 = inlined_call_operand.vmem [shape: bf16[512,4], index: 1, kind: input, shape index: {}]
  %s2 = inlined_call_operand.vmem [shape: f32[512,1], index: 2, kind: input, shape index: {}]
  %s3 = inlined_call_operand.vmem [shape: bf16[256,512], index: 3, kind: input, shape index: {}]
  %s4 = inlined_call_operand.vmem [shape: f32[256,1], index: 4, kind: input, shape index: {}]
  %s5 = inlined_call_operand.vmem [shape: bf16[8,256], index: 5, kind: input, shape index: {}]
  %s6 = inlined_call_operand.vmem [shape: f32[8,1], index: 6, kind: input, shape index: {}]
  %s7 = inlined_call_operand.hbm [shape: f32[2,8,256], index: 7, kind: output, shape index: {}]
  %s8 = sld [smem:[#allocation0]]
  $region61: #{tpu_custom_call.1} parent=0
    _
  %s10 = ssub.s32 1, %s8
  %s11 = scalar_select 0, %s10, %s8
  $region1: #{tpu_custom_call.1} parent=0
    #allocation2 [shape = 'u8[16384]{0}', space=vmem, size = 0x4000, scoped, tag = 'output window, operand 0']
    #allocation3 [shape = 's32[2]{0}', space=sflag, size = 0x8, scoped, tag = 'scoped memory for tpu_custom_call.1']
    %12 = vsyncpa [#allocation3], 0
    %s13 = scalar_lea.sflag [#allocation3], 1
    %14 = vsyncpa %s13, 0
    loop: start=0, step=1, limit=4
    $region2: #{tpu_custom_call.1} parent=1 // loop_pre_header
      _
    $region3: #{tpu_custom_call.1} parent=1 // loop_header
      %s16 = sphi 0, %s20
      %p17 = scmp.ge.s32.totalorder %s16, 4
      %s23 = sphi 0, %s35
      %s24 = sphi 0, %s31
      %s25 = sphi 0, %s23
      %s26 = sphi 0, %s24
      %s27 = sphi 0, %s25
      %s28 = sphi 0, %s26
      %s40 = sphi 0, %s42
      %s43 = sphi 0, %s40
      %s44 = sphi 0, %s43
      %s60 = sphi 0, %s44
      %s64 = sphi 0, %s64
      %s66 = sphi 0, %s64
      %s67 = sphi 0, %s66
      %s81 = sphi 0, %s67
      %s85 = sphi 0, %s85
      %s87 = sphi 0, %s85
      %s88 = sphi 0, %s87
      %s102 = sphi 0, %s88
      %s106 = sphi 0, %s106
      %s108 = sphi 0, %s106
      %s109 = sphi 0, %s108
      %s123 = sphi 0, %s109
      %s127 = sphi 0, %s127
      %s129 = sphi 0, %s127
      %s130 = sphi 0, %s129
      %s144 = sphi 0, %s130
      %s148 = sphi 0, %s148
      %s150 = sphi 0, %s148
      %s151 = sphi 0, %s150
      %s165 = sphi 0, %s151
      %s169 = sphi 0, %s169
      %s171 = sphi 0, %s169
      %s172 = sphi 0, %s171
      %s186 = sphi 0, %s172
      %s194 = sphi 0, %s196
      %s197 = sphi 0, %s194
      %s198 = sphi 0, %s197
      %s214 = sphi 0, %s198
    $region4: #{tpu_custom_call.1} parent=1 // loop_header_branch
      %19 = sbr.rel (%p17) target = $region8
    $region5: #{tpu_custom_call.1} parent=1 // loop_body
      %s21 = ssub.s32 %s16, 1
      %s22 = ssub.s32 %s16, 2
      %s29 = sadd.s32 1, %s24
      %p30 = scmp.ge.s32.totalorder %s29, 1
      %s31 = scalar_select %p30, 0, %s29
      %s32 = sadd.s32 1, %s23
      %s33 = scalar_select %p30, %s32, %s23
      %p34 = scmp.ge.s32.totalorder %s33, 2
      %s35 = scalar_select %p34, 0, %s33
      %s36 = ssub.s32 %s23, %s35
      %s37 = ssub.s32 %s24, %s31
      %s38 = sor.u32 %s36, %s37
      %p39 = scmp.eq.s32.totalorder %s38, 0
      %s41 = sadd.s32 %s40, 1
      %s42 = scalar_select %p39, %s40, %s41
      %p45 = pneg %p39
      %p46 = scmp.eq.s32.totalorder %s16, 1
      %p47 = por %p45, %p46
      %p48 = scmp.ne.s32.totalorder %s40, %s43
      %p49 = scmp.eq.s32.totalorder %s16, 0
      %p50 = por %p48, %p49
      %p51 = scmp.ne.s32.totalorder %s40, %s43
      %p52 = scmp.eq.s32.totalorder %s21, 1
      %p53 = por %p51, %p52
      %p54 = scmp.ne.s32.totalorder %s43, %s44
      %p55 = scmp.eq.s32.totalorder %s21, 0
      %p56 = por %p54, %p55
      %p57 = scmp.ne.s32.totalorder %s43, %s44
      %p58 = scmp.eq.s32.totalorder %s22, 1
      %p59 = por %p57, %p58
      %p61 = scmp.ne.s32.totalorder %s44, %s60
      %p62 = scmp.eq.s32.totalorder %s22, 0
      %p63 = por %p61, %p62
      %s65 = sadd.s32 %s64, 1
      %p68 = scmp.eq.s32.totalorder %s16, 1
      %p69 = scmp.ne.s32.totalorder %s64, %s66
      %p70 = scmp.eq.s32.totalorder %s16, 0
      %p71 = por %p69, %p70
      %p72 = scmp.ne.s32.totalorder %s64, %s66
      %p73 = scmp.eq.s32.totalorder %s21, 1
      %p74 = por %p72, %p73
      %p75 = scmp.ne.s32.totalorder %s66, %s67
      %p76 = scmp.eq.s32.totalorder %s21, 0
      %p77 = por %p75, %p76
      %p78 = scmp.ne.s32.totalorder %s66, %s67
      %p79 = scmp.eq.s32.totalorder %s22, 1
      %p80 = por %p78, %p79
      %p82 = scmp.ne.s32.totalorder %s67, %s81
      %p83 = scmp.eq.s32.totalorder %s22, 0
      %p84 = por %p82, %p83
      %s86 = sadd.s32 %s85, 1
      %p89 = scmp.eq.s32.totalorder %s16, 1
      %p90 = scmp.ne.s32.totalorder %s85, %s87
      %p91 = scmp.eq.s32.totalorder %s16, 0
      %p92 = por %p90, %p91
      %p93 = scmp.ne.s32.totalorder %s85, %s87
      %p94 = scmp.eq.s32.totalorder %s21, 1
      %p95 = por %p93, %p94
      %p96 = scmp.ne.s32.totalorder %s87, %s88
      %p97 = scmp.eq.s32.totalorder %s21, 0
      %p98 = por %p96, %p97
      %p99 = scmp.ne.s32.totalorder %s87, %s88
      %p100 = scmp.eq.s32.totalorder %s22, 1
      %p101 = por %p99, %p100
      %p103 = scmp.ne.s32.totalorder %s88, %s102
      %p104 = scmp.eq.s32.totalorder %s22, 0
      %p105 = por %p103, %p104
      %s107 = sadd.s32 %s106, 1
      %p110 = scmp.eq.s32.totalorder %s16, 1
      %p111 = scmp.ne.s32.totalorder %s106, %s108
      %p112 = scmp.eq.s32.totalorder %s16, 0
      %p113 = por %p111, %p112
      %p114 = scmp.ne.s32.totalorder %s106, %s108
      %p115 = scmp.eq.s32.totalorder %s21, 1
      %p116 = por %p114, %p115
      %p117 = scmp.ne.s32.totalorder %s108, %s109
      %p118 = scmp.eq.s32.totalorder %s21, 0
      %p119 = por %p117, %p118
      %p120 = scmp.ne.s32.totalorder %s108, %s109
      %p121 = scmp.eq.s32.totalorder %s22, 1
      %p122 = por %p120, %p121
      %p124 = scmp.ne.s32.totalorder %s109, %s123
      %p125 = scmp.eq.s32.totalorder %s22, 0
      %p126 = por %p124, %p125
      %s128 = sadd.s32 %s127, 1
      %p131 = scmp.eq.s32.totalorder %s16, 1
      %p132 = scmp.ne.s32.totalorder %s127, %s129
      %p133 = scmp.eq.s32.totalorder %s16, 0
      %p134 = por %p132, %p133
      %p135 = scmp.ne.s32.totalorder %s127, %s129
      %p136 = scmp.eq.s32.totalorder %s21, 1
      %p137 = por %p135, %p136
      %p138 = scmp.ne.s32.totalorder %s129, %s130
      %p139 = scmp.eq.s32.totalorder %s21, 0
      %p140 = por %p138, %p139
      %p141 = scmp.ne.s32.totalorder %s129, %s130
      %p142 = scmp.eq.s32.totalorder %s22, 1
      %p143 = por %p141, %p142
      %p145 = scmp.ne.s32.totalorder %s130, %s144
      %p146 = scmp.eq.s32.totalorder %s22, 0
      %p147 = por %p145, %p146
      %s149 = sadd.s32 %s148, 1
      %p152 = scmp.eq.s32.totalorder %s16, 1
      %p153 = scmp.ne.s32.totalorder %s148, %s150
      %p154 = scmp.eq.s32.totalorder %s16, 0
      %p155 = por %p153, %p154
      %p156 = scmp.ne.s32.totalorder %s148, %s150
      %p157 = scmp.eq.s32.totalorder %s21, 1
      %p158 = por %p156, %p157
      %p159 = scmp.ne.s32.totalorder %s150, %s151
      %p160 = scmp.eq.s32.totalorder %s21, 0
      %p161 = por %p159, %p160
      %p162 = scmp.ne.s32.totalorder %s150, %s151
      %p163 = scmp.eq.s32.totalorder %s22, 1
      %p164 = por %p162, %p163
      %p166 = scmp.ne.s32.totalorder %s151, %s165
      %p167 = scmp.eq.s32.totalorder %s22, 0
      %p168 = por %p166, %p167
      %s170 = sadd.s32 %s169, 1
      %p173 = scmp.eq.s32.totalorder %s16, 1
      %p174 = scmp.ne.s32.totalorder %s169, %s171
      %p175 = scmp.eq.s32.totalorder %s16, 0
      %p176 = por %p174, %p175
      %p177 = scmp.ne.s32.totalorder %s169, %s171
      %p178 = scmp.eq.s32.totalorder %s21, 1
      %p179 = por %p177, %p178
      %p180 = scmp.ne.s32.totalorder %s171, %s172
      %p181 = scmp.eq.s32.totalorder %s21, 0
      %p182 = por %p180, %p181
      %p183 = scmp.ne.s32.totalorder %s171, %s172
      %p184 = scmp.eq.s32.totalorder %s22, 1
      %p185 = por %p183, %p184
      %p187 = scmp.ne.s32.totalorder %s172, %s186
      %p188 = scmp.eq.s32.totalorder %s22, 0
      %p189 = por %p187, %p188
      %s190 = ssub.s32 %s23, %s35
      %s191 = ssub.s32 %s24, %s31
      %s192 = sor.u32 %s190, %s191
      %p193 = scmp.eq.s32.totalorder %s192, 0
      %s195 = sadd.s32 %s194, 1
      %s196 = scalar_select %p193, %s194, %s195
      %p199 = pneg %p193
      %p200 = scmp.eq.s32.totalorder %s16, 1
      %p201 = por %p199, %p200
      %p202 = scmp.ne.s32.totalorder %s194, %s197
      %p203 = scmp.eq.s32.totalorder %s16, 0
      %p204 = por %p202, %p203
      %p205 = scmp.ne.s32.totalorder %s194, %s197
      %p206 = scmp.eq.s32.totalorder %s21, 1
      %p207 = por %p205, %p206
      %p208 = scmp.ne.s32.totalorder %s197, %s198
      %p209 = scmp.eq.s32.totalorder %s21, 0
      %p210 = por %p208, %p209
      %p211 = scmp.ne.s32.totalorder %s197, %s198
      %p212 = scmp.eq.s32.totalorder %s22, 1
      %p213 = por %p211, %p212
      %p215 = scmp.ne.s32.totalorder %s198, %s214
      %p216 = scmp.eq.s32.totalorder %s22, 0
      %p217 = por %p215, %p216
      %p218 = scmp.le.s32.totalorder 1, %s16
      %p219 = scmp.lt.s32.totalorder %s16, 3
      %p220 = pnand %p218, %p219
      %p221 = pneg %p220
      // Predicated region
      $region9: #{tpu_custom_call.1} parent=5 // pred_check
        _
      $region10: #{tpu_custom_call.1} parent=5 // pred_check_branch
        %223 = sbr.rel (%p220) target = $region12
      $region11: #{tpu_custom_call.1} parent=5 // pred_region
        %s224 = ssub.s32 %s16, 1
        // Predicated region
        $region13: #{tpu_custom_call.1} parent=11 // pred_check
          %p225 = pneg %p77
        $region14: #{tpu_custom_call.1} parent=11 // pred_check_branch
          %227 = sbr.rel (%p225) target = $region16
        $region15: #{tpu_custom_call.1} parent=11 // pred_region
          _
        $region16: #{tpu_custom_call.1} parent=11 // pred_fallthru
          _
        // Predicated region
        $region17: #{tpu_custom_call.1} parent=11 // pred_check
          %p228 = pneg %p98
        $region18: #{tpu_custom_call.1} parent=11 // pred_check_branch
          %230 = sbr.rel (%p228) target = $region20
        $region19: #{tpu_custom_call.1} parent=11 // pred_region
          _
        $region20: #{tpu_custom_call.1} parent=11 // pred_fallthru
          _
        // Predicated region
        $region21: #{tpu_custom_call.1} parent=11 // pred_check
          %p231 = pneg %p119
        $region22: #{tpu_custom_call.1} parent=11 // pred_check_branch
          %233 = sbr.rel (%p231) target = $region24
        $region23: #{tpu_custom_call.1} parent=11 // pred_region
          _
        $region24: #{tpu_custom_call.1} parent=11 // pred_fallthru
          _
        // Predicated region
        $region25: #{tpu_custom_call.1} parent=11 // pred_check
          %p234 = pneg %p140
        $region26: #{tpu_custom_call.1} parent=11 // pred_check_branch
          %236 = sbr.rel (%p234) target = $region28
        $region27: #{tpu_custom_call.1} parent=11 // pred_region
          _
        $region28: #{tpu_custom_call.1} parent=11 // pred_fallthru
          _
        // Predicated region
        $region29: #{tpu_custom_call.1} parent=11 // pred_check
          %p237 = pneg %p161
        $region30: #{tpu_custom_call.1} parent=11 // pred_check_branch
          %239 = sbr.rel (%p237) target = $region32
        $region31: #{tpu_custom_call.1} parent=11 // pred_region
          _
        $region32: #{tpu_custom_call.1} parent=11 // pred_fallthru
          _
        // Predicated region
        $region33: #{tpu_custom_call.1} parent=11 // pred_check
          %p240 = pneg %p182
        $region34: #{tpu_custom_call.1} parent=11 // pred_check_branch
          %242 = sbr.rel (%p240) target = $region36
        $region35: #{tpu_custom_call.1} parent=11 // pred_region
          _
        $region36: #{tpu_custom_call.1} parent=11 // pred_fallthru
          _
      $region12: #{tpu_custom_call.1} parent=5 // pred_fallthru
        _
      %p243 = scmp.lt.s32.totalorder %s16, 2
      // Predicated region
      $region37: #{tpu_custom_call.1} parent=5 // pred_check
        %p244 = pneg %p243
      $region38: #{tpu_custom_call.1} parent=5 // pred_check_branch
        %246 = sbr.rel (%p244) target = $region40
      $region39: #{tpu_custom_call.1} parent=5 // pred_region
        // Predicated region
        $region41: #{tpu_custom_call.1} parent=39 // pred_check
          %p247 = pneg %p50
        $region42: #{tpu_custom_call.1} parent=39 // pred_check_branch
          %249 = sbr.rel (%p247) target = $region44
        $region43: #{tpu_custom_call.1} parent=39 // pred_region
          %s250 = smul.u32 2, %s24
          %p251 = scmp.lt.s32.totalorder %s23, 1
          %s252 = scalar_select %p251, %s23, 1
          %p253 = scmp.lt.s32.totalorder %s250, 1
          %s254 = scalar_select %p253, %s250, 1
          %s255 = smul.addr %s252, 2
          %s256 = sadd.s32 %s254, %s255
          %s257 = smul.addr %s256, 2
          %s258 = scalar_lea.vmem %s0, %s257
          %s259 = smul.u32 2, %s24
        $region44: #{tpu_custom_call.1} parent=39 // pred_fallthru
          _
      $region40: #{tpu_custom_call.1} parent=5 // pred_fallthru
        _
      %p260 = scmp.le.s32.totalorder 1, %s16
      %p261 = scmp.lt.s32.totalorder %s16, 3
      %p262 = pnand %p260, %p261
      %p263 = pneg %p262
      // Predicated region
      $region45: #{tpu_custom_call.1} parent=5 // pred_check
        _
      $region46: #{tpu_custom_call.1} parent=5 // pred_check_branch
        %265 = sbr.rel (%p262) target = $region48
      $region47: #{tpu_custom_call.1} parent=5 // pred_region
        %s266 = ssub.s32 %s16, 1
        %s267 = smul.u32 2, %s26
        %p268 = scmp.lt.s32.totalorder %s25, 1
        %s269 = scalar_select %p268, %s25, 1
        %p270 = scmp.lt.s32.totalorder %s267, 1
        %s271 = scalar_select %p270, %s267, 1
        %s272 = smul.addr %s269, 2
        %s273 = sadd.s32 %s271, %s272
        %s274 = smul.addr %s273, 2
        %s275 = scalar_lea.vmem %s0, %s274
        %p276 = pneg %p56
        %p277 = pneg %p53
        %p278 = pneg %p77
        %p279 = pneg %p74
        %p280 = pneg %p98
        %p281 = pneg %p95
        %p282 = pneg %p119
        %p283 = pneg %p116
        %p284 = pneg %p140
        %p285 = pneg %p137
        %p286 = pneg %p161
        %p287 = pneg %p158
        %p288 = pneg %p182
        %p289 = pneg %p179
        %p290 = pneg %p210
        %p291 = pneg %p207
        %s292 = sand.u32 %s197, 1
        %s293 = scalar_lea.sflag [#allocation3], %s292
        %s294 = sand.u32 %s197, 1
        %s295 = smul.addr %s294, 16
        %s296 = scalar_lea.vmem [#allocation2], %s295
        %s297 = smul.u32 2, %s26
        %p298 = scmp.lt.s32.totalorder %s25, 1
        %s299 = scalar_select %p298, %s25, 1
        %p300 = scmp.lt.s32.totalorder %s297, 1
        %s301 = scalar_select %p300, %s297, 1
        %s302 = smul.addr %s299, 2
        %s303 = sadd.s32 %s301, %s302
        %s304 = smul.addr %s303, 2
        %s305 = scalar_lea.vmem %s0, %s304
        %s306 = smul.u32 2, %s26
        %s307 = smul.u32 2, %s26
        %v309 = vld [vmem:[%s1] sm:$0xf]
        %v310 = vld [vmem:[%s1 + $0x4] sm:$0xf]
        %v311 = vld [vmem:[%s1 + $0x8] sm:$0xf]
        %v312 = vld [vmem:[%s1 + $0xc] sm:$0xf]
        %v313 = vld [vmem:[%s1 + $0x10] sm:$0xf]
        %v314 = vld [vmem:[%s1 + $0x14] sm:$0xf]
        %v315 = vld [vmem:[%s1 + $0x18] sm:$0xf]
        %v316 = vld [vmem:[%s1 + $0x1c] sm:$0xf]
        %v317 = vld [vmem:[%s1 + $0x20] sm:$0xf]
        %v318 = vld [vmem:[%s1 + $0x24] sm:$0xf]
        %v319 = vld [vmem:[%s1 + $0x28] sm:$0xf]
        %v320 = vld [vmem:[%s1 + $0x2c] sm:$0xf]
        %v321 = vld [vmem:[%s1 + $0x30] sm:$0xf]
        %v322 = vld [vmem:[%s1 + $0x34] sm:$0xf]
        %v323 = vld [vmem:[%s1 + $0x38] sm:$0xf]
        %v324 = vld [vmem:[%s1 + $0x3c] sm:$0xf]
        %v325 = vld [vmem:[%s1 + $0x40] sm:$0xf]
        %v326 = vld [vmem:[%s1 + $0x44] sm:$0xf]
        %v327 = vld [vmem:[%s1 + $0x48] sm:$0xf]
        %v328 = vld [vmem:[%s1 + $0x4c] sm:$0xf]
        %v329 = vld [vmem:[%s1 + $0x50] sm:$0xf]
        %v330 = vld [vmem:[%s1 + $0x54] sm:$0xf]
        %v331 = vld [vmem:[%s1 + $0x58] sm:$0xf]
        %v332 = vld [vmem:[%s1 + $0x5c] sm:$0xf]
        %v333 = vld [vmem:[%s1 + $0x60] sm:$0xf]
        %v334 = vld [vmem:[%s1 + $0x64] sm:$0xf]
        %v335 = vld [vmem:[%s1 + $0x68] sm:$0xf]
        %v336 = vld [vmem:[%s1 + $0x6c] sm:$0xf]
        %v337 = vld [vmem:[%s1 + $0x70] sm:$0xf]
        %v338 = vld [vmem:[%s1 + $0x74] sm:$0xf]
        %v339 = vld [vmem:[%s1 + $0x78] sm:$0xf]
        %v340 = vld [vmem:[%s1 + $0x7c] sm:$0xf]
        %v341 = vld [vmem:[%s1 + $0x80] sm:$0xf]
        %v342 = vld [vmem:[%s1 + $0x84] sm:$0xf]
        %v343 = vld [vmem:[%s1 + $0x88] sm:$0xf]
        %v344 = vld [vmem:[%s1 + $0x8c] sm:$0xf]
        %v345 = vld [vmem:[%s1 + $0x90] sm:$0xf]
        %v346 = vld [vmem:[%s1 + $0x94] sm:$0xf]
        %v347 = vld [vmem:[%s1 + $0x98] sm:$0xf]
        %v348 = vld [vmem:[%s1 + $0x9c] sm:$0xf]
        %v349 = vld [vmem:[%s1 + $0xa0] sm:$0xf]
        %v350 = vld [vmem:[%s1 + $0xa4] sm:$0xf]
        %v351 = vld [vmem:[%s1 + $0xa8] sm:$0xf]
        %v352 = vld [vmem:[%s1 + $0xac] sm:$0xf]
        %v353 = vld [vmem:[%s1 + $0xb0] sm:$0xf]
        %v354 = vld [vmem:[%s1 + $0xb4] sm:$0xf]
        %v355 = vld [vmem:[%s1 + $0xb8] sm:$0xf]
        %v356 = vld [vmem:[%s1 + $0xbc] sm:$0xf]
        %v357 = vld [vmem:[%s1 + $0xc0] sm:$0xf]
        %v358 = vld [vmem:[%s1 + $0xc4] sm:$0xf]
        %v359 = vld [vmem:[%s1 + $0xc8] sm:$0xf]
        %v360 = vld [vmem:[%s1 + $0xcc] sm:$0xf]
        %v361 = vld [vmem:[%s1 + $0xd0] sm:$0xf]
        %v362 = vld [vmem:[%s1 + $0xd4] sm:$0xf]
        %v363 = vld [vmem:[%s1 + $0xd8] sm:$0xf]
        %v364 = vld [vmem:[%s1 + $0xdc] sm:$0xf]
        %v365 = vld [vmem:[%s1 + $0xe0] sm:$0xf]
        %v366 = vld [vmem:[%s1 + $0xe4] sm:$0xf]
        %v367 = vld [vmem:[%s1 + $0xe8] sm:$0xf]
        %v368 = vld [vmem:[%s1 + $0xec] sm:$0xf]
        %v369 = vld [vmem:[%s1 + $0xf0] sm:$0xf]
        %v370 = vld [vmem:[%s1 + $0xf4] sm:$0xf]
        %v371 = vld [vmem:[%s1 + $0xf8] sm:$0xf]
        %v372 = vld [vmem:[%s1 + $0xfc] sm:$0xf]
        %v373 = vld [vmem:[%s305] sm:$0xf]
        %v374 = vld [vmem:[%s2] sm:$0xff]
        %v375 = vld [vmem:[%s2 + $0x8] sm:$0xff]
        %v376 = vld [vmem:[%s2 + $0x10] sm:$0xff]
        %v377 = vld [vmem:[%s2 + $0x18] sm:$0xff]
        %v378 = vld [vmem:[%s2 + $0x20] sm:$0xff]
        %v379 = vld [vmem:[%s2 + $0x28] sm:$0xff]
        %v380 = vld [vmem:[%s2 + $0x30] sm:$0xff]
        %v381 = vld [vmem:[%s2 + $0x38] sm:$0xff]
        %v382 = vld [vmem:[%s2 + $0x40] sm:$0xff]
        %v383 = vld [vmem:[%s2 + $0x48] sm:$0xff]
        %v384 = vld [vmem:[%s2 + $0x50] sm:$0xff]
        %v385 = vld [vmem:[%s2 + $0x58] sm:$0xff]
        %v386 = vld [vmem:[%s2 + $0x60] sm:$0xff]
        %v387 = vld [vmem:[%s2 + $0x68] sm:$0xff]
        %v388 = vld [vmem:[%s2 + $0x70] sm:$0xff]
        %v389 = vld [vmem:[%s2 + $0x78] sm:$0xff]
        %v390 = vld [vmem:[%s2 + $0x80] sm:$0xff]
        %v391 = vld [vmem:[%s2 + $0x88] sm:$0xff]
        %v392 = vld [vmem:[%s2 + $0x90] sm:$0xff]
        %v393 = vld [vmem:[%s2 + $0x98] sm:$0xff]
        %v394 = vld [vmem:[%s2 + $0xa0] sm:$0xff]
        %v395 = vld [vmem:[%s2 + $0xa8] sm:$0xff]
        %v396 = vld [vmem:[%s2 + $0xb0] sm:$0xff]
        %v397 = vld [vmem:[%s2 + $0xb8] sm:$0xff]
        %v398 = vld [vmem:[%s2 + $0xc0] sm:$0xff]
        %v399 = vld [vmem:[%s2 + $0xc8] sm:$0xff]
        %v400 = vld [vmem:[%s2 + $0xd0] sm:$0xff]
        %v401 = vld [vmem:[%s2 + $0xd8] sm:$0xff]
        %v402 = vld [vmem:[%s2 + $0xe0] sm:$0xff]
        %v403 = vld [vmem:[%s2 + $0xe8] sm:$0xff]
        %v404 = vld [vmem:[%s2 + $0xf0] sm:$0xff]
        %v405 = vld [vmem:[%s2 + $0xf8] sm:$0xff]
        %v406 = vld [vmem:[%s2 + $0x100] sm:$0xff]
        %v407 = vld [vmem:[%s2 + $0x108] sm:$0xff]
        %v408 = vld [vmem:[%s2 + $0x110] sm:$0xff]
        %v409 = vld [vmem:[%s2 + $0x118] sm:$0xff]
        %v410 = vld [vmem:[%s2 + $0x120] sm:$0xff]
        %v411 = vld [vmem:[%s2 + $0x128] sm:$0xff]
        %v412 = vld [vmem:[%s2 + $0x130] sm:$0xff]
        %v413 = vld [vmem:[%s2 + $0x138] sm:$0xff]
        %v414 = vld [vmem:[%s2 + $0x140] sm:$0xff]
        %v415 = vld [vmem:[%s2 + $0x148] sm:$0xff]
        %v416 = vld [vmem:[%s2 + $0x150] sm:$0xff]
        %v417 = vld [vmem:[%s2 + $0x158] sm:$0xff]
        %v418 = vld [vmem:[%s2 + $0x160] sm:$0xff]
        %v419 = vld [vmem:[%s2 + $0x168] sm:$0xff]
        %v420 = vld [vmem:[%s2 + $0x170] sm:$0xff]
        %v421 = vld [vmem:[%s2 + $0x178] sm:$0xff]
        %v422 = vld [vmem:[%s2 + $0x180] sm:$0xff]
        %v423 = vld [vmem:[%s2 + $0x188] sm:$0xff]
        %v424 = vld [vmem:[%s2 + $0x190] sm:$0xff]
        %v425 = vld [vmem:[%s2 + $0x198] sm:$0xff]
        %v426 = vld [vmem:[%s2 + $0x1a0] sm:$0xff]
        %v427 = vld [vmem:[%s2 + $0x1a8] sm:$0xff]
        %v428 = vld [vmem:[%s2 + $0x1b0] sm:$0xff]
        %v429 = vld [vmem:[%s2 + $0x1b8] sm:$0xff]
        %v430 = vld [vmem:[%s2 + $0x1c0] sm:$0xff]
        %v431 = vld [vmem:[%s2 + $0x1c8] sm:$0xff]
        %v432 = vld [vmem:[%s2 + $0x1d0] sm:$0xff]
        %v433 = vld [vmem:[%s2 + $0x1d8] sm:$0xff]
        %v434 = vld [vmem:[%s2 + $0x1e0] sm:$0xff]
        %v435 = vld [vmem:[%s2 + $0x1e8] sm:$0xff]
        %v436 = vld [vmem:[%s2 + $0x1f0] sm:$0xff]
        %v437 = vld [vmem:[%s2 + $0x1f8] sm:$0xff]
        %439 = vset.pattern.permute.xlu0 0
        %440 = vperm.xlu0 %439, %v374
        %v441 = vpop.permute.xlu0 %440
        %444 = vset.pattern.permute.xlu0 0
        %445 = vperm.xlu0 %444, %v375
        %v446 = vpop.permute.xlu0 %445
        %449 = vset.pattern.permute.xlu0 0
        %450 = vperm.xlu0 %449, %v376
        %v451 = vpop.permute.xlu0 %450
        %454 = vset.pattern.permute.xlu0 0
        %455 = vperm.xlu0 %454, %v377
        %v456 = vpop.permute.xlu0 %455
        %459 = vset.pattern.permute.xlu0 0
        %460 = vperm.xlu0 %459, %v378
        %v461 = vpop.permute.xlu0 %460
        %464 = vset.pattern.permute.xlu0 0
        %465 = vperm.xlu0 %464, %v379
        %v466 = vpop.permute.xlu0 %465
        %469 = vset.pattern.permute.xlu0 0
        %470 = vperm.xlu0 %469, %v380
        %v471 = vpop.permute.xlu0 %470
        %474 = vset.pattern.permute.xlu0 0
        %475 = vperm.xlu0 %474, %v381
        %v476 = vpop.permute.xlu0 %475
        %479 = vset.pattern.permute.xlu0 0
        %480 = vperm.xlu0 %479, %v382
        %v481 = vpop.permute.xlu0 %480
        %484 = vset.pattern.permute.xlu0 0
        %485 = vperm.xlu0 %484, %v383
        %v486 = vpop.permute.xlu0 %485
        %489 = vset.pattern.permute.xlu0 0
        %490 = vperm.xlu0 %489, %v384
        %v491 = vpop.permute.xlu0 %490
        %494 = vset.pattern.permute.xlu0 0
        %495 = vperm.xlu0 %494, %v385
        %v496 = vpop.permute.xlu0 %495
        %499 = vset.pattern.permute.xlu0 0
        %500 = vperm.xlu0 %499, %v386
        %v501 = vpop.permute.xlu0 %500
        %504 = vset.pattern.permute.xlu0 0
        %505 = vperm.xlu0 %504, %v387
        %v506 = vpop.permute.xlu0 %505
        %509 = vset.pattern.permute.xlu0 0
        %510 = vperm.xlu0 %509, %v388
        %v511 = vpop.permute.xlu0 %510
        %514 = vset.pattern.permute.xlu0 0
        %515 = vperm.xlu0 %514, %v389
        %v516 = vpop.permute.xlu0 %515
        %519 = vset.pattern.permute.xlu0 0
        %520 = vperm.xlu0 %519, %v390
        %v521 = vpop.permute.xlu0 %520
        %524 = vset.pattern.permute.xlu0 0
        %525 = vperm.xlu0 %524, %v391
        %v526 = vpop.permute.xlu0 %525
        %529 = vset.pattern.permute.xlu0 0
        %530 = vperm.xlu0 %529, %v392
        %v531 = vpop.permute.xlu0 %530
        %534 = vset.pattern.permute.xlu0 0
        %535 = vperm.xlu0 %534, %v393
        %v536 = vpop.permute.xlu0 %535
        %539 = vset.pattern.permute.xlu0 0
        %540 = vperm.xlu0 %539, %v394
        %v541 = vpop.permute.xlu0 %540
        %544 = vset.pattern.permute.xlu0 0
        %545 = vperm.xlu0 %544, %v395
        %v546 = vpop.permute.xlu0 %545
        %549 = vset.pattern.permute.xlu0 0
        %550 = vperm.xlu0 %549, %v396
        %v551 = vpop.permute.xlu0 %550
        %554 = vset.pattern.permute.xlu0 0
        %555 = vperm.xlu0 %554, %v397
        %v556 = vpop.permute.xlu0 %555
        %559 = vset.pattern.permute.xlu0 0
        %560 = vperm.xlu0 %559, %v398
        %v561 = vpop.permute.xlu0 %560
        %564 = vset.pattern.permute.xlu0 0
        %565 = vperm.xlu0 %564, %v399
        %v566 = vpop.permute.xlu0 %565
        %569 = vset.pattern.permute.xlu0 0
        %570 = vperm.xlu0 %569, %v400
        %v571 = vpop.permute.xlu0 %570
        %574 = vset.pattern.permute.xlu0 0
        %575 = vperm.xlu0 %574, %v401
        %v576 = vpop.permute.xlu0 %575
        %579 = vset.pattern.permute.xlu0 0
        %580 = vperm.xlu0 %579, %v402
        %v581 = vpop.permute.xlu0 %580
        %584 = vset.pattern.permute.xlu0 0
        %585 = vperm.xlu0 %584, %v403
        %v586 = vpop.permute.xlu0 %585
        %589 = vset.pattern.permute.xlu0 0
        %590 = vperm.xlu0 %589, %v404
        %v591 = vpop.permute.xlu0 %590
        %594 = vset.pattern.permute.xlu0 0
        %595 = vperm.xlu0 %594, %v405
        %v596 = vpop.permute.xlu0 %595
        %599 = vset.pattern.permute.xlu0 0
        %600 = vperm.xlu0 %599, %v406
        %v601 = vpop.permute.xlu0 %600
        %604 = vset.pattern.permute.xlu0 0
        %605 = vperm.xlu0 %604, %v407
        %v606 = vpop.permute.xlu0 %605
        %609 = vset.pattern.permute.xlu0 0
        %610 = vperm.xlu0 %609, %v408
        %v611 = vpop.permute.xlu0 %610
        %614 = vset.pattern.permute.xlu0 0
        %615 = vperm.xlu0 %614, %v409
        %v616 = vpop.permute.xlu0 %615
        %619 = vset.pattern.permute.xlu0 0
        %620 = vperm.xlu0 %619, %v410
        %v621 = vpop.permute.xlu0 %620
        %624 = vset.pattern.permute.xlu0 0
        %625 = vperm.xlu0 %624, %v411
        %v626 = vpop.permute.xlu0 %625
        %629 = vset.pattern.permute.xlu0 0
        %630 = vperm.xlu0 %629, %v412
        %v631 = vpop.permute.xlu0 %630
        %634 = vset.pattern.permute.xlu0 0
        %635 = vperm.xlu0 %634, %v413
        %v636 = vpop.permute.xlu0 %635
        %639 = vset.pattern.permute.xlu0 0
        %640 = vperm.xlu0 %639, %v414
        %v641 = vpop.permute.xlu0 %640
        %644 = vset.pattern.permute.xlu0 0
        %645 = vperm.xlu0 %644, %v415
        %v646 = vpop.permute.xlu0 %645
        %649 = vset.pattern.permute.xlu0 0
        %650 = vperm.xlu0 %649, %v416
        %v651 = vpop.permute.xlu0 %650
        %654 = vset.pattern.permute.xlu0 0
        %655 = vperm.xlu0 %654, %v417
        %v656 = vpop.permute.xlu0 %655
        %659 = vset.pattern.permute.xlu0 0
        %660 = vperm.xlu0 %659, %v418
        %v661 = vpop.permute.xlu0 %660
        %664 = vset.pattern.permute.xlu0 0
        %665 = vperm.xlu0 %664, %v419
        %v666 = vpop.permute.xlu0 %665
        %669 = vset.pattern.permute.xlu0 0
        %670 = vperm.xlu0 %669, %v420
        %v671 = vpop.permute.xlu0 %670
        %674 = vset.pattern.permute.xlu0 0
        %675 = vperm.xlu0 %674, %v421
        %v676 = vpop.permute.xlu0 %675
        %679 = vset.pattern.permute.xlu0 0
        %680 = vperm.xlu0 %679, %v422
        %v681 = vpop.permute.xlu0 %680
        %684 = vset.pattern.permute.xlu0 0
        %685 = vperm.xlu0 %684, %v423
        %v686 = vpop.permute.xlu0 %685
        %689 = vset.pattern.permute.xlu0 0
        %690 = vperm.xlu0 %689, %v424
        %v691 = vpop.permute.xlu0 %690
        %694 = vset.pattern.permute.xlu0 0
        %695 = vperm.xlu0 %694, %v425
        %v696 = vpop.permute.xlu0 %695
        %699 = vset.pattern.permute.xlu0 0
        %700 = vperm.xlu0 %699, %v426
        %v701 = vpop.permute.xlu0 %700
        %704 = vset.pattern.permute.xlu0 0
        %705 = vperm.xlu0 %704, %v427
        %v706 = vpop.permute.xlu0 %705
        %709 = vset.pattern.permute.xlu0 0
        %710 = vperm.xlu0 %709, %v428
        %v711 = vpop.permute.xlu0 %710
        %714 = vset.pattern.permute.xlu0 0
        %715 = vperm.xlu0 %714, %v429
        %v716 = vpop.permute.xlu0 %715
        %719 = vset.pattern.permute.xlu0 0
        %720 = vperm.xlu0 %719, %v430
        %v721 = vpop.permute.xlu0 %720
        %724 = vset.pattern.permute.xlu0 0
        %725 = vperm.xlu0 %724, %v431
        %v726 = vpop.permute.xlu0 %725
        %729 = vset.pattern.permute.xlu0 0
        %730 = vperm.xlu0 %729, %v432
        %v731 = vpop.permute.xlu0 %730
        %734 = vset.pattern.permute.xlu0 0
        %735 = vperm.xlu0 %734, %v433
        %v736 = vpop.permute.xlu0 %735
        %739 = vset.pattern.permute.xlu0 0
        %740 = vperm.xlu0 %739, %v434
        %v741 = vpop.permute.xlu0 %740
        %744 = vset.pattern.permute.xlu0 0
        %745 = vperm.xlu0 %744, %v435
        %v746 = vpop.permute.xlu0 %745
        %749 = vset.pattern.permute.xlu0 0
        %750 = vperm.xlu0 %749, %v436
        %v751 = vpop.permute.xlu0 %750
        %754 = vset.pattern.permute.xlu0 0
        %755 = vperm.xlu0 %754, %v437
        %v756 = vpop.permute.xlu0 %755
        %v822 = vunpack.c.l.b16 %v309
        %v823 = vunpack.c.l.b16 %v310
        %v824 = vunpack.c.l.b16 %v311
        %v825 = vunpack.c.l.b16 %v312
        %v826 = vunpack.c.l.b16 %v313
        %v827 = vunpack.c.l.b16 %v314
        %v828 = vunpack.c.l.b16 %v315
        %v829 = vunpack.c.l.b16 %v316
        %v830 = vunpack.c.l.b16 %v317
        %v831 = vunpack.c.l.b16 %v318
        %v832 = vunpack.c.l.b16 %v319
        %v833 = vunpack.c.l.b16 %v320
        %v834 = vunpack.c.l.b16 %v321
        %v835 = vunpack.c.l.b16 %v322
        %v836 = vunpack.c.l.b16 %v323
        %v837 = vunpack.c.l.b16 %v324
        %v838 = vunpack.c.l.b16 %v325
        %v839 = vunpack.c.l.b16 %v326
        %v840 = vunpack.c.l.b16 %v327
        %v841 = vunpack.c.l.b16 %v328
        %v842 = vunpack.c.l.b16 %v329
        %v843 = vunpack.c.l.b16 %v330
        %v844 = vunpack.c.l.b16 %v331
        %v845 = vunpack.c.l.b16 %v332
        %v846 = vunpack.c.l.b16 %v333
        %v847 = vunpack.c.l.b16 %v334
        %v848 = vunpack.c.l.b16 %v335
        %v849 = vunpack.c.l.b16 %v336
        %v850 = vunpack.c.l.b16 %v337
        %v851 = vunpack.c.l.b16 %v338
        %v852 = vunpack.c.l.b16 %v339
        %v853 = vunpack.c.l.b16 %v340
        %v854 = vunpack.c.l.b16 %v341
        %v855 = vunpack.c.l.b16 %v342
        %v856 = vunpack.c.l.b16 %v343
        %v857 = vunpack.c.l.b16 %v344
        %v858 = vunpack.c.l.b16 %v345
        %v859 = vunpack.c.l.b16 %v346
        %v860 = vunpack.c.l.b16 %v347
        %v861 = vunpack.c.l.b16 %v348
        %v862 = vunpack.c.l.b16 %v349
        %v863 = vunpack.c.l.b16 %v350
        %v864 = vunpack.c.l.b16 %v351
        %v865 = vunpack.c.l.b16 %v352
        %v866 = vunpack.c.l.b16 %v353
        %v867 = vunpack.c.l.b16 %v354
        %v868 = vunpack.c.l.b16 %v355
        %v869 = vunpack.c.l.b16 %v356
        %v870 = vunpack.c.l.b16 %v357
        %v871 = vunpack.c.l.b16 %v358
        %v872 = vunpack.c.l.b16 %v359
        %v873 = vunpack.c.l.b16 %v360
        %v874 = vunpack.c.l.b16 %v361
        %v875 = vunpack.c.l.b16 %v362
        %v876 = vunpack.c.l.b16 %v363
        %v877 = vunpack.c.l.b16 %v364
        %v878 = vunpack.c.l.b16 %v365
        %v879 = vunpack.c.l.b16 %v366
        %v880 = vunpack.c.l.b16 %v367
        %v881 = vunpack.c.l.b16 %v368
        %v882 = vunpack.c.l.b16 %v369
        %v883 = vunpack.c.l.b16 %v370
        %v884 = vunpack.c.l.b16 %v371
        %v885 = vunpack.c.l.b16 %v372
        %v886 = vpack.c.b16 %v823, %v822
        %v887 = vpack.c.b16 %v825, %v824
        %v888 = vpack.c.b16 %v827, %v826
        %v889 = vpack.c.b16 %v829, %v828
        %v890 = vpack.c.b16 %v831, %v830
        %v891 = vpack.c.b16 %v833, %v832
        %v892 = vpack.c.b16 %v835, %v834
        %v893 = vpack.c.b16 %v837, %v836
        %v894 = vpack.c.b16 %v839, %v838
        %v895 = vpack.c.b16 %v841, %v840
        %v896 = vpack.c.b16 %v843, %v842
        %v897 = vpack.c.b16 %v845, %v844
        %v898 = vpack.c.b16 %v847, %v846
        %v899 = vpack.c.b16 %v849, %v848
        %v900 = vpack.c.b16 %v851, %v850
        %v901 = vpack.c.b16 %v853, %v852
        %v902 = vpack.c.b16 %v855, %v854
        %v903 = vpack.c.b16 %v857, %v856
        %v904 = vpack.c.b16 %v859, %v858
        %v905 = vpack.c.b16 %v861, %v860
        %v906 = vpack.c.b16 %v863, %v862
        %v907 = vpack.c.b16 %v865, %v864
        %v908 = vpack.c.b16 %v867, %v866
        %v909 = vpack.c.b16 %v869, %v868
        %v910 = vpack.c.b16 %v871, %v870
        %v911 = vpack.c.b16 %v873, %v872
        %v912 = vpack.c.b16 %v875, %v874
        %v913 = vpack.c.b16 %v877, %v876
        %v914 = vpack.c.b16 %v879, %v878
        %v915 = vpack.c.b16 %v881, %v880
        %v916 = vpack.c.b16 %v883, %v882
        %v917 = vpack.c.b16 %v885, %v884
        %v920 = vunpack.c.l.s4 1983009808
        %v921 = vunpack.c.0.s8 %v920
        %v922 = vlaneseq
        %v923 = vshrl.u32 %v922, 7
        %v924 = vsub.s32 %v921, %v923
        %v925 = vrot.slane %v373, %v924
        %v926 = vcombine.high %v925, %v925
        %vm927 = vcmask 31744
        %v929 = vsel %vm927, %v886, 0
        %v932 = vsel %vm927, %v887, 0
        %v935 = vsel %vm927, %v888, 0
        %v938 = vsel %vm927, %v889, 0
        %v941 = vsel %vm927, %v890, 0
        %v944 = vsel %vm927, %v891, 0
        %v947 = vsel %vm927, %v892, 0
        %v950 = vsel %vm927, %v893, 0
        %v953 = vsel %vm927, %v894, 0
        %v956 = vsel %vm927, %v895, 0
        %v959 = vsel %vm927, %v896, 0
        %v962 = vsel %vm927, %v897, 0
        %v965 = vsel %vm927, %v898, 0
        %v968 = vsel %vm927, %v899, 0
        %v971 = vsel %vm927, %v900, 0
        %v974 = vsel %vm927, %v901, 0
        %v977 = vsel %vm927, %v902, 0
        %v980 = vsel %vm927, %v903, 0
        %v983 = vsel %vm927, %v904, 0
        %v986 = vsel %vm927, %v905, 0
        %v989 = vsel %vm927, %v906, 0
        %v992 = vsel %vm927, %v907, 0
        %v995 = vsel %vm927, %v908, 0
        %v998 = vsel %vm927, %v909, 0
        %v1001 = vsel %vm927, %v910, 0
        %v1004 = vsel %vm927, %v911, 0
        %v1007 = vsel %vm927, %v912, 0
        %v1010 = vsel %vm927, %v913, 0
        %v1013 = vsel %vm927, %v914, 0
        %v1016 = vsel %vm927, %v915, 0
        %v1019 = vsel %vm927, %v916, 0
        %v1022 = vsel %vm927, %v917, 0
        %vm1024 = vcmask 1041408
        %v1026 = vsel %vm1024, %v925, 0
        %v1029 = vsel %vm1024, %v926, 0
        %1031 = vmatprep.subr.bf16.mxu0 0
        %1032 = vmatpush1.bf16.msra.mxu0 0
        %1033 = vmatprep.subr.bf16.mxu0 0
        %1034 = vmatpush1.bf16.msra.mxu0 0
        %1035 = vmatprep.subr.bf16.mxu0 0
        %1036 = vmatpush1.bf16.msra.mxu0 0
        %1037 = vmatprep.subr.bf16.mxu0 0
        %1038 = vmatpush1.bf16.msra.mxu0 0
        %1039 = vmatprep.subr.bf16.mxu0 0
        %1040 = vmatpush1.bf16.msra.mxu0 0
        %1041 = vmatprep.subr.bf16.mxu0 0
        %1042 = vmatpush1.bf16.msra.mxu0 0
        %1043 = vmatprep.subr.bf16.mxu0 0
        %1044 = vmatpush1.bf16.msra.mxu0 0
        %1045 = vmatprep.subr.bf16.mxu0 %v1029
        %1046 = vmatpush1.bf16.msra.mxu0 %v1026
        %1047 = vmatprep.subr.bf16.mxu0 0
        %1048 = vmatpush2.bf16.msra.mxu0 0
        %1049 = vmatprep.subr.bf16.mxu0 0
        %1050 = vmatpush2.bf16.msra.mxu0 0
        %1051 = vmatprep.subr.bf16.mxu0 0
        %1052 = vmatpush2.bf16.msra.mxu0 0
        %1053 = vmatprep.subr.bf16.mxu0 0
        %1054 = vmatpush2.bf16.msra.mxu0 0
        %1055 = vmatprep.subr.bf16.mxu0 0
        %1056 = vmatpush2.bf16.msra.mxu0 0
        %1057 = vmatprep.subr.bf16.mxu0 0
        %1058 = vmatpush2.bf16.msra.mxu0 0
        %1059 = vmatprep.subr.bf16.mxu0 0
        %1060 = vmatpush2.bf16.msra.mxu0 0
        %1061 = vmatprep.subr.bf16.mxu0 0
        %1062 = vmatpush2.bf16.msra.mxu0 0
        %1063 = vmatprep.mubr.bf16.mxu0 0
        %1064 = vmatmul.mubr.bf16.gmra.mxu0 %v929
        %v1065 = vpop.f32.mrf.mxu0
        %v1066 = vadd.f32 %v441, %v1065
        %v1067 = vpop.f32.mrf.mxu0
        %v1068 = vadd.f32 %v441, %v1067
        %v1069 = vpop.f32.mrf.mxu0
        %v1070 = vadd.f32 %v446, %v1069
        %v1071 = vpop.f32.mrf.mxu0
        %v1072 = vadd.f32 %v446, %v1071
        %1073 = vmatprep.mubr.bf16.mxu0 0
        %1074 = vmatmul.mubr.bf16.gmra.mxu0 %v932
        %v1075 = vpop.f32.mrf.mxu0
        %v1076 = vadd.f32 %v451, %v1075
        %v1077 = vpop.f32.mrf.mxu0
        %v1078 = vadd.f32 %v451, %v1077
        %v1079 = vpop.f32.mrf.mxu0
        %v1080 = vadd.f32 %v456, %v1079
        %v1081 = vpop.f32.mrf.mxu0
        %v1082 = vadd.f32 %v456, %v1081
        %1083 = vmatprep.mubr.bf16.mxu0 0
        %1084 = vmatmul.mubr.bf16.gmra.mxu0 %v935
        %v1085 = vpop.f32.mrf.mxu0
        %v1086 = vadd.f32 %v461, %v1085
        %v1087 = vpop.f32.mrf.mxu0
        %v1088 = vadd.f32 %v461, %v1087
        %v1089 = vpop.f32.mrf.mxu0
        %v1090 = vadd.f32 %v466, %v1089
        %v1091 = vpop.f32.mrf.mxu0
        %v1092 = vadd.f32 %v466, %v1091
        %1093 = vmatprep.mubr.bf16.mxu0 0
        %1094 = vmatmul.mubr.bf16.gmra.mxu0 %v938
        %v1095 = vpop.f32.mrf.mxu0
        %v1096 = vadd.f32 %v471, %v1095
        %v1097 = vpop.f32.mrf.mxu0
        %v1098 = vadd.f32 %v471, %v1097
        %v1099 = vpop.f32.mrf.mxu0
        %v1100 = vadd.f32 %v476, %v1099
        %v1101 = vpop.f32.mrf.mxu0
        %v1102 = vadd.f32 %v476, %v1101
        %1103 = vmatprep.mubr.bf16.mxu0 0
        %1104 = vmatmul.mubr.bf16.gmra.mxu0 %v941
        %v1105 = vpop.f32.mrf.mxu0
        %v1106 = vadd.f32 %v481, %v1105
        %v1107 = vpop.f32.mrf.mxu0
        %v1108 = vadd.f32 %v481, %v1107
        %v1109 = vpop.f32.mrf.mxu0
        %v1110 = vadd.f32 %v486, %v1109
        %v1111 = vpop.f32.mrf.mxu0
        %v1112 = vadd.f32 %v486, %v1111
        %1113 = vmatprep.mubr.bf16.mxu0 0
        %1114 = vmatmul.mubr.bf16.gmra.mxu0 %v944
        %v1115 = vpop.f32.mrf.mxu0
        %v1116 = vadd.f32 %v491, %v1115
        %v1117 = vpop.f32.mrf.mxu0
        %v1118 = vadd.f32 %v491, %v1117
        %v1119 = vpop.f32.mrf.mxu0
        %v1120 = vadd.f32 %v496, %v1119
        %v1121 = vpop.f32.mrf.mxu0
        %v1122 = vadd.f32 %v496, %v1121
        %1123 = vmatprep.mubr.bf16.mxu0 0
        %1124 = vmatmul.mubr.bf16.gmra.mxu0 %v947
        %v1125 = vpop.f32.mrf.mxu0
        %v1126 = vadd.f32 %v501, %v1125
        %v1127 = vpop.f32.mrf.mxu0
        %v1128 = vadd.f32 %v501, %v1127
        %v1129 = vpop.f32.mrf.mxu0
        %v1130 = vadd.f32 %v506, %v1129
        %v1131 = vpop.f32.mrf.mxu0
        %v1132 = vadd.f32 %v506, %v1131
        %1133 = vmatprep.mubr.bf16.mxu0 0
        %1134 = vmatmul.mubr.bf16.gmra.mxu0 %v950
        %v1135 = vpop.f32.mrf.mxu0
        %v1136 = vadd.f32 %v511, %v1135
        %v1137 = vpop.f32.mrf.mxu0
        %v1138 = vadd.f32 %v511, %v1137
        %v1139 = vpop.f32.mrf.mxu0
        %v1140 = vadd.f32 %v516, %v1139
        %v1141 = vpop.f32.mrf.mxu0
        %v1142 = vadd.f32 %v516, %v1141
        %1143 = vmatprep.mubr.bf16.mxu0 0
        %1144 = vmatmul.mubr.bf16.gmra.mxu0 %v953
        %v1145 = vpop.f32.mrf.mxu0
        %v1146 = vadd.f32 %v521, %v1145
        %v1147 = vpop.f32.mrf.mxu0
        %v1148 = vadd.f32 %v521, %v1147
        %v1149 = vpop.f32.mrf.mxu0
        %v1150 = vadd.f32 %v526, %v1149
        %v1151 = vpop.f32.mrf.mxu0
        %v1152 = vadd.f32 %v526, %v1151
        %1153 = vmatprep.mubr.bf16.mxu0 0
        %1154 = vmatmul.mubr.bf16.gmra.mxu0 %v956
        %v1155 = vpop.f32.mrf.mxu0
        %v1156 = vadd.f32 %v531, %v1155
        %v1157 = vpop.f32.mrf.mxu0
        %v1158 = vadd.f32 %v531, %v1157
        %v1159 = vpop.f32.mrf.mxu0
        %v1160 = vadd.f32 %v536, %v1159
        %v1161 = vpop.f32.mrf.mxu0
        %v1162 = vadd.f32 %v536, %v1161
        %1163 = vmatprep.mubr.bf16.mxu0 0
        %1164 = vmatmul.mubr.bf16.gmra.mxu0 %v959
        %v1165 = vpop.f32.mrf.mxu0
        %v1166 = vadd.f32 %v541, %v1165
        %v1167 = vpop.f32.mrf.mxu0
        %v1168 = vadd.f32 %v541, %v1167
        %v1169 = vpop.f32.mrf.mxu0
        %v1170 = vadd.f32 %v546, %v1169
        %v1171 = vpop.f32.mrf.mxu0
        %v1172 = vadd.f32 %v546, %v1171
        %1173 = vmatprep.mubr.bf16.mxu0 0
        %1174 = vmatmul.mubr.bf16.gmra.mxu0 %v962
        %v1175 = vpop.f32.mrf.mxu0
        %v1176 = vadd.f32 %v551, %v1175
        %v1177 = vpop.f32.mrf.mxu0
        %v1178 = vadd.f32 %v551, %v1177
        %v1179 = vpop.f32.mrf.mxu0
        %v1180 = vadd.f32 %v556, %v1179
        %v1181 = vpop.f32.mrf.mxu0
        %v1182 = vadd.f32 %v556, %v1181
        %1183 = vmatprep.mubr.bf16.mxu0 0
        %1184 = vmatmul.mubr.bf16.gmra.mxu0 %v965
        %v1185 = vpop.f32.mrf.mxu0
        %v1186 = vadd.f32 %v561, %v1185
        %v1187 = vpop.f32.mrf.mxu0
        %v1188 = vadd.f32 %v561, %v1187
        %v1189 = vpop.f32.mrf.mxu0
        %v1190 = vadd.f32 %v566, %v1189
        %v1191 = vpop.f32.mrf.mxu0
        %v1192 = vadd.f32 %v566, %v1191
        %1193 = vmatprep.mubr.bf16.mxu0 0
        %1194 = vmatmul.mubr.bf16.gmra.mxu0 %v968
        %v1195 = vpop.f32.mrf.mxu0
        %v1196 = vadd.f32 %v571, %v1195
        %v1197 = vpop.f32.mrf.mxu0
        %v1198 = vadd.f32 %v571, %v1197
        %v1199 = vpop.f32.mrf.mxu0
        %v1200 = vadd.f32 %v576, %v1199
        %v1201 = vpop.f32.mrf.mxu0
        %v1202 = vadd.f32 %v576, %v1201
        %1203 = vmatprep.mubr.bf16.mxu0 0
        %1204 = vmatmul.mubr.bf16.gmra.mxu0 %v971
        %v1205 = vpop.f32.mrf.mxu0
        %v1206 = vadd.f32 %v581, %v1205
        %v1207 = vpop.f32.mrf.mxu0
        %v1208 = vadd.f32 %v581, %v1207
        %v1209 = vpop.f32.mrf.mxu0
        %v1210 = vadd.f32 %v586, %v1209
        %v1211 = vpop.f32.mrf.mxu0
        %v1212 = vadd.f32 %v586, %v1211
        %1213 = vmatprep.mubr.bf16.mxu0 0
        %1214 = vmatmul.mubr.bf16.gmra.mxu0 %v974
        %v1215 = vpop.f32.mrf.mxu0
        %v1216 = vadd.f32 %v591, %v1215
        %v1217 = vpop.f32.mrf.mxu0
        %v1218 = vadd.f32 %v591, %v1217
        %v1219 = vpop.f32.mrf.mxu0
        %v1220 = vadd.f32 %v596, %v1219
        %v1221 = vpop.f32.mrf.mxu0
        %v1222 = vadd.f32 %v596, %v1221
        %1223 = vmatprep.mubr.bf16.mxu0 0
        %1224 = vmatmul.mubr.bf16.gmra.mxu0 %v977
        %v1225 = vpop.f32.mrf.mxu0
        %v1226 = vadd.f32 %v601, %v1225
        %v1227 = vpop.f32.mrf.mxu0
        %v1228 = vadd.f32 %v601, %v1227
        %v1229 = vpop.f32.mrf.mxu0
        %v1230 = vadd.f32 %v606, %v1229
        %v1231 = vpop.f32.mrf.mxu0
        %v1232 = vadd.f32 %v606, %v1231
        %1233 = vmatprep.mubr.bf16.mxu0 0
        %1234 = vmatmul.mubr.bf16.gmra.mxu0 %v980
        %v1235 = vpop.f32.mrf.mxu0
        %v1236 = vadd.f32 %v611, %v1235
        %v1237 = vpop.f32.mrf.mxu0
        %v1238 = vadd.f32 %v611, %v1237
        %v1239 = vpop.f32.mrf.mxu0
        %v1240 = vadd.f32 %v616, %v1239
        %v1241 = vpop.f32.mrf.mxu0
        %v1242 = vadd.f32 %v616, %v1241
        %1243 = vmatprep.mubr.bf16.mxu0 0
        %1244 = vmatmul.mubr.bf16.gmra.mxu0 %v983
        %v1245 = vpop.f32.mrf.mxu0
        %v1246 = vadd.f32 %v621, %v1245
        %v1247 = vpop.f32.mrf.mxu0
        %v1248 = vadd.f32 %v621, %v1247
        %v1249 = vpop.f32.mrf.mxu0
        %v1250 = vadd.f32 %v626, %v1249
        %v1251 = vpop.f32.mrf.mxu0
        %v1252 = vadd.f32 %v626, %v1251
        %1253 = vmatprep.mubr.bf16.mxu0 0
        %1254 = vmatmul.mubr.bf16.gmra.mxu0 %v986
        %v1255 = vpop.f32.mrf.mxu0
        %v1256 = vadd.f32 %v631, %v1255
        %v1257 = vpop.f32.mrf.mxu0
        %v1258 = vadd.f32 %v631, %v1257
        %v1259 = vpop.f32.mrf.mxu0
        %v1260 = vadd.f32 %v636, %v1259
        %v1261 = vpop.f32.mrf.mxu0
        %v1262 = vadd.f32 %v636, %v1261
        %1263 = vmatprep.mubr.bf16.mxu0 0
        %1264 = vmatmul.mubr.bf16.gmra.mxu0 %v989
        %v1265 = vpop.f32.mrf.mxu0
        %v1266 = vadd.f32 %v641, %v1265
        %v1267 = vpop.f32.mrf.mxu0
        %v1268 = vadd.f32 %v641, %v1267
        %v1269 = vpop.f32.mrf.mxu0
        %v1270 = vadd.f32 %v646, %v1269
        %v1271 = vpop.f32.mrf.mxu0
        %v1272 = vadd.f32 %v646, %v1271
        %1273 = vmatprep.mubr.bf16.mxu0 0
        %1274 = vmatmul.mubr.bf16.gmra.mxu0 %v992
        %v1275 = vpop.f32.mrf.mxu0
        %v1276 = vadd.f32 %v651, %v1275
        %v1277 = vpop.f32.mrf.mxu0
        %v1278 = vadd.f32 %v651, %v1277
        %v1279 = vpop.f32.mrf.mxu0
        %v1280 = vadd.f32 %v656, %v1279
        %v1281 = vpop.f32.mrf.mxu0
        %v1282 = vadd.f32 %v656, %v1281
        %1283 = vmatprep.mubr.bf16.mxu0 0
        %1284 = vmatmul.mubr.bf16.gmra.mxu0 %v995
        %v1285 = vpop.f32.mrf.mxu0
        %v1286 = vadd.f32 %v661, %v1285
        %v1287 = vpop.f32.mrf.mxu0
        %v1288 = vadd.f32 %v661, %v1287
        %v1289 = vpop.f32.mrf.mxu0
        %v1290 = vadd.f32 %v666, %v1289
        %v1291 = vpop.f32.mrf.mxu0
        %v1292 = vadd.f32 %v666, %v1291
        %1293 = vmatprep.mubr.bf16.mxu0 0
        %1294 = vmatmul.mubr.bf16.gmra.mxu0 %v998
        %v1295 = vpop.f32.mrf.mxu0
        %v1296 = vadd.f32 %v671, %v1295
        %v1297 = vpop.f32.mrf.mxu0
        %v1298 = vadd.f32 %v671, %v1297
        %v1299 = vpop.f32.mrf.mxu0
        %v1300 = vadd.f32 %v676, %v1299
        %v1301 = vpop.f32.mrf.mxu0
        %v1302 = vadd.f32 %v676, %v1301
        %1303 = vmatprep.mubr.bf16.mxu0 0
        %1304 = vmatmul.mubr.bf16.gmra.mxu0 %v1001
        %v1305 = vpop.f32.mrf.mxu0
        %v1306 = vadd.f32 %v681, %v1305
        %v1307 = vpop.f32.mrf.mxu0
        %v1308 = vadd.f32 %v681, %v1307
        %v1309 = vpop.f32.mrf.mxu0
        %v1310 = vadd.f32 %v686, %v1309
        %v1311 = vpop.f32.mrf.mxu0
        %v1312 = vadd.f32 %v686, %v1311
        %1313 = vmatprep.mubr.bf16.mxu0 0
        %1314 = vmatmul.mubr.bf16.gmra.mxu0 %v1004
        %v1315 = vpop.f32.mrf.mxu0
        %v1316 = vadd.f32 %v691, %v1315
        %v1317 = vpop.f32.mrf.mxu0
        %v1318 = vadd.f32 %v691, %v1317
        %v1319 = vpop.f32.mrf.mxu0
        %v1320 = vadd.f32 %v696, %v1319
        %v1321 = vpop.f32.mrf.mxu0
        %v1322 = vadd.f32 %v696, %v1321
        %1323 = vmatprep.mubr.bf16.mxu0 0
        %1324 = vmatmul.mubr.bf16.gmra.mxu0 %v1007
        %v1325 = vpop.f32.mrf.mxu0
        %v1326 = vadd.f32 %v701, %v1325
        %v1327 = vpop.f32.mrf.mxu0
        %v1328 = vadd.f32 %v701, %v1327
        %v1329 = vpop.f32.mrf.mxu0
        %v1330 = vadd.f32 %v706, %v1329
        %v1331 = vpop.f32.mrf.mxu0
        %v1332 = vadd.f32 %v706, %v1331
        %1333 = vmatprep.mubr.bf16.mxu0 0
        %1334 = vmatmul.mubr.bf16.gmra.mxu0 %v1010
        %v1335 = vpop.f32.mrf.mxu0
        %v1336 = vadd.f32 %v711, %v1335
        %v1337 = vpop.f32.mrf.mxu0
        %v1338 = vadd.f32 %v711, %v1337
        %v1339 = vpop.f32.mrf.mxu0
        %v1340 = vadd.f32 %v716, %v1339
        %v1341 = vpop.f32.mrf.mxu0
        %v1342 = vadd.f32 %v716, %v1341
        %1343 = vmatprep.mubr.bf16.mxu0 0
        %1344 = vmatmul.mubr.bf16.gmra.mxu0 %v1013
        %v1345 = vpop.f32.mrf.mxu0
        %v1346 = vadd.f32 %v721, %v1345
        %v1347 = vpop.f32.mrf.mxu0
        %v1348 = vadd.f32 %v721, %v1347
        %v1349 = vpop.f32.mrf.mxu0
        %v1350 = vadd.f32 %v726, %v1349
        %v1351 = vpop.f32.mrf.mxu0
        %v1352 = vadd.f32 %v726, %v1351
        %1353 = vmatprep.mubr.bf16.mxu0 0
        %1354 = vmatmul.mubr.bf16.gmra.mxu0 %v1016
        %v1355 = vpop.f32.mrf.mxu0
        %v1356 = vadd.f32 %v731, %v1355
        %v1357 = vpop.f32.mrf.mxu0
        %v1358 = vadd.f32 %v731, %v1357
        %v1359 = vpop.f32.mrf.mxu0
        %v1360 = vadd.f32 %v736, %v1359
        %v1361 = vpop.f32.mrf.mxu0
        %v1362 = vadd.f32 %v736, %v1361
        %1363 = vmatprep.mubr.bf16.mxu0 0
        %1364 = vmatmul.mubr.bf16.gmra.mxu0 %v1019
        %v1365 = vpop.f32.mrf.mxu0
        %v1366 = vadd.f32 %v741, %v1365
        %v1367 = vpop.f32.mrf.mxu0
        %v1368 = vadd.f32 %v741, %v1367
        %v1369 = vpop.f32.mrf.mxu0
        %v1370 = vadd.f32 %v746, %v1369
        %v1371 = vpop.f32.mrf.mxu0
        %v1372 = vadd.f32 %v746, %v1371
        %1373 = vmatprep.mubr.bf16.mxu0 0
        %1374 = vmatmul.mubr.bf16.gmra.mxu0 %v1022
        %v1375 = vpop.f32.mrf.mxu0
        %v1376 = vadd.f32 %v751, %v1375
        %v1377 = vpop.f32.mrf.mxu0
        %v1378 = vadd.f32 %v751, %v1377
        %v1379 = vpop.f32.mrf.mxu0
        %v1380 = vadd.f32 %v756, %v1379
        %v1381 = vpop.f32.mrf.mxu0
        %v1382 = vadd.f32 %v756, %v1381
        %1383 = vdwg.mxu0
        %v1384 = vmax.f32 %v1066, 0.0
        %v1385 = vmax.f32 %v1068, 0.0
        %v1386 = vmax.f32 %v1070, 0.0
        %v1387 = vmax.f32 %v1072, 0.0
        %v1388 = vmax.f32 %v1076, 0.0
        %v1389 = vmax.f32 %v1078, 0.0
        %v1390 = vmax.f32 %v1080, 0.0
        %v1391 = vmax.f32 %v1082, 0.0
        %v1392 = vmax.f32 %v1086, 0.0
        %v1393 = vmax.f32 %v1088, 0.0
        %v1394 = vmax.f32 %v1090, 0.0
        %v1395 = vmax.f32 %v1092, 0.0
        %v1396 = vmax.f32 %v1096, 0.0
        %v1397 = vmax.f32 %v1098, 0.0
        %v1398 = vmax.f32 %v1100, 0.0
        %v1399 = vmax.f32 %v1102, 0.0
        %v1400 = vmax.f32 %v1106, 0.0
        %v1401 = vmax.f32 %v1108, 0.0
        %v1402 = vmax.f32 %v1110, 0.0
        %v1403 = vmax.f32 %v1112, 0.0
        %v1404 = vmax.f32 %v1116, 0.0
        %v1405 = vmax.f32 %v1118, 0.0
        %v1406 = vmax.f32 %v1120, 0.0
        %v1407 = vmax.f32 %v1122, 0.0
        %v1408 = vmax.f32 %v1126, 0.0
        %v1409 = vmax.f32 %v1128, 0.0
        %v1410 = vmax.f32 %v1130, 0.0
        %v1411 = vmax.f32 %v1132, 0.0
        %v1412 = vmax.f32 %v1136, 0.0
        %v1413 = vmax.f32 %v1138, 0.0
        %v1414 = vmax.f32 %v1140, 0.0
        %v1415 = vmax.f32 %v1142, 0.0
        %v1416 = vmax.f32 %v1146, 0.0
        %v1417 = vmax.f32 %v1148, 0.0
        %v1418 = vmax.f32 %v1150, 0.0
        %v1419 = vmax.f32 %v1152, 0.0
        %v1420 = vmax.f32 %v1156, 0.0
        %v1421 = vmax.f32 %v1158, 0.0
        %v1422 = vmax.f32 %v1160, 0.0
        %v1423 = vmax.f32 %v1162, 0.0
        %v1424 = vmax.f32 %v1166, 0.0
        %v1425 = vmax.f32 %v1168, 0.0
        %v1426 = vmax.f32 %v1170, 0.0
        %v1427 = vmax.f32 %v1172, 0.0
        %v1428 = vmax.f32 %v1176, 0.0
        %v1429 = vmax.f32 %v1178, 0.0
        %v1430 = vmax.f32 %v1180, 0.0
        %v1431 = vmax.f32 %v1182, 0.0
        %v1432 = vmax.f32 %v1186, 0.0
        %v1433 = vmax.f32 %v1188, 0.0
        %v1434 = vmax.f32 %v1190, 0.0
        %v1435 = vmax.f32 %v1192, 0.0
        %v1436 = vmax.f32 %v1196, 0.0
        %v1437 = vmax.f32 %v1198, 0.0
        %v1438 = vmax.f32 %v1200, 0.0
        %v1439 = vmax.f32 %v1202, 0.0
        %v1440 = vmax.f32 %v1206, 0.0
        %v1441 = vmax.f32 %v1208, 0.0
        %v1442 = vmax.f32 %v1210, 0.0
        %v1443 = vmax.f32 %v1212, 0.0
        %v1444 = vmax.f32 %v1216, 0.0
        %v1445 = vmax.f32 %v1218, 0.0
        %v1446 = vmax.f32 %v1220, 0.0
        %v1447 = vmax.f32 %v1222, 0.0
        %v1448 = vmax.f32 %v1226, 0.0
        %v1449 = vmax.f32 %v1228, 0.0
        %v1450 = vmax.f32 %v1230, 0.0
        %v1451 = vmax.f32 %v1232, 0.0
        %v1452 = vmax.f32 %v1236, 0.0
        %v1453 = vmax.f32 %v1238, 0.0
        %v1454 = vmax.f32 %v1240, 0.0
        %v1455 = vmax.f32 %v1242, 0.0
        %v1456 = vmax.f32 %v1246, 0.0
        %v1457 = vmax.f32 %v1248, 0.0
        %v1458 = vmax.f32 %v1250, 0.0
        %v1459 = vmax.f32 %v1252, 0.0
        %v1460 = vmax.f32 %v1256, 0.0
        %v1461 = vmax.f32 %v1258, 0.0
        %v1462 = vmax.f32 %v1260, 0.0
        %v1463 = vmax.f32 %v1262, 0.0
        %v1464 = vmax.f32 %v1266, 0.0
        %v1465 = vmax.f32 %v1268, 0.0
        %v1466 = vmax.f32 %v1270, 0.0
        %v1467 = vmax.f32 %v1272, 0.0
        %v1468 = vmax.f32 %v1276, 0.0
        %v1469 = vmax.f32 %v1278, 0.0
        %v1470 = vmax.f32 %v1280, 0.0
        %v1471 = vmax.f32 %v1282, 0.0
        %v1472 = vmax.f32 %v1286, 0.0
        %v1473 = vmax.f32 %v1288, 0.0
        %v1474 = vmax.f32 %v1290, 0.0
        %v1475 = vmax.f32 %v1292, 0.0
        %v1476 = vmax.f32 %v1296, 0.0
        %v1477 = vmax.f32 %v1298, 0.0
        %v1478 = vmax.f32 %v1300, 0.0
        %v1479 = vmax.f32 %v1302, 0.0
        %v1480 = vmax.f32 %v1306, 0.0
        %v1481 = vmax.f32 %v1308, 0.0
        %v1482 = vmax.f32 %v1310, 0.0
        %v1483 = vmax.f32 %v1312, 0.0
        %v1484 = vmax.f32 %v1316, 0.0
        %v1485 = vmax.f32 %v1318, 0.0
        %v1486 = vmax.f32 %v1320, 0.0
        %v1487 = vmax.f32 %v1322, 0.0
        %v1488 = vmax.f32 %v1326, 0.0
        %v1489 = vmax.f32 %v1328, 0.0
        %v1490 = vmax.f32 %v1330, 0.0
        %v1491 = vmax.f32 %v1332, 0.0
        %v1492 = vmax.f32 %v1336, 0.0
        %v1493 = vmax.f32 %v1338, 0.0
        %v1494 = vmax.f32 %v1340, 0.0
        %v1495 = vmax.f32 %v1342, 0.0
        %v1496 = vmax.f32 %v1346, 0.0
        %v1497 = vmax.f32 %v1348, 0.0
        %v1498 = vmax.f32 %v1350, 0.0
        %v1499 = vmax.f32 %v1352, 0.0
        %v1500 = vmax.f32 %v1356, 0.0
        %v1501 = vmax.f32 %v1358, 0.0
        %v1502 = vmax.f32 %v1360, 0.0
        %v1503 = vmax.f32 %v1362, 0.0
        %v1504 = vmax.f32 %v1366, 0.0
        %v1505 = vmax.f32 %v1368, 0.0
        %v1506 = vmax.f32 %v1370, 0.0
        %v1507 = vmax.f32 %v1372, 0.0
        %v1508 = vmax.f32 %v1376, 0.0
        %v1509 = vmax.f32 %v1378, 0.0
        %v1510 = vmax.f32 %v1380, 0.0
        %v1511 = vmax.f32 %v1382, 0.0
        %v1512 = vld [vmem:[%s3] sm:$0xff]
        %v1513 = vld [vmem:[%s3 + $0x8] sm:$0xff]
        %v1514 = vld [vmem:[%s3 + $0x10] sm:$0xff]
        %v1515 = vld [vmem:[%s3 + $0x18] sm:$0xff]
        %v1516 = vld [vmem:[%s3 + $0x20] sm:$0xff]
        %v1517 = vld [vmem:[%s3 + $0x28] sm:$0xff]
        %v1518 = vld [vmem:[%s3 + $0x30] sm:$0xff]
        %v1519 = vld [vmem:[%s3 + $0x38] sm:$0xff]
        %v1520 = vld [vmem:[%s3 + $0x40] sm:$0xff]
        %v1521 = vld [vmem:[%s3 + $0x48] sm:$0xff]
        %v1522 = vld [vmem:[%s3 + $0x50] sm:$0xff]
        %v1523 = vld [vmem:[%s3 + $0x58] sm:$0xff]
        %v1524 = vld [vmem:[%s3 + $0x60] sm:$0xff]
        %v1525 = vld [vmem:[%s3 + $0x68] sm:$0xff]
        %v1526 = vld [vmem:[%s3 + $0x70] sm:$0xff]
        %v1527 = vld [vmem:[%s3 + $0x78] sm:$0xff]
        %v1528 = vld [vmem:[%s3 + $0x80] sm:$0xff]
        %v1529 = vld [vmem:[%s3 + $0x88] sm:$0xff]
        %v1530 = vld [vmem:[%s3 + $0x90] sm:$0xff]
        %v1531 = vld [vmem:[%s3 + $0x98] sm:$0xff]
        %v1532 = vld [vmem:[%s3 + $0xa0] sm:$0xff]
        %v1533 = vld [vmem:[%s3 + $0xa8] sm:$0xff]
        %v1534 = vld [vmem:[%s3 + $0xb0] sm:$0xff]
        %v1535 = vld [vmem:[%s3 + $0xb8] sm:$0xff]
        %v1536 = vld [vmem:[%s3 + $0xc0] sm:$0xff]
        %v1537 = vld [vmem:[%s3 + $0xc8] sm:$0xff]
        %v1538 = vld [vmem:[%s3 + $0xd0] sm:$0xff]
        %v1539 = vld [vmem:[%s3 + $0xd8] sm:$0xff]
        %v1540 = vld [vmem:[%s3 + $0xe0] sm:$0xff]
        %v1541 = vld [vmem:[%s3 + $0xe8] sm:$0xff]
        %v1542 = vld [vmem:[%s3 + $0xf0] sm:$0xff]
        %v1543 = vld [vmem:[%s3 + $0xf8] sm:$0xff]
        %v1544 = vld [vmem:[%s3 + $0x100] sm:$0xff]
        %v1545 = vld [vmem:[%s3 + $0x108] sm:$0xff]
        %v1546 = vld [vmem:[%s3 + $0x110] sm:$0xff]
        %v1547 = vld [vmem:[%s3 + $0x118] sm:$0xff]
        %v1548 = vld [vmem:[%s3 + $0x120] sm:$0xff]
        %v1549 = vld [vmem:[%s3 + $0x128] sm:$0xff]
        %v1550 = vld [vmem:[%s3 + $0x130] sm:$0xff]
        %v1551 = vld [vmem:[%s3 + $0x138] sm:$0xff]
        %v1552 = vld [vmem:[%s3 + $0x140] sm:$0xff]
        %v1553 = vld [vmem:[%s3 + $0x148] sm:$0xff]
        %v1554 = vld [vmem:[%s3 + $0x150] sm:$0xff]
        %v1555 = vld [vmem:[%s3 + $0x158] sm:$0xff]
        %v1556 = vld [vmem:[%s3 + $0x160] sm:$0xff]
        %v1557 = vld [vmem:[%s3 + $0x168] sm:$0xff]
        %v1558 = vld [vmem:[%s3 + $0x170] sm:$0xff]
        %v1559 = vld [vmem:[%s3 + $0x178] sm:$0xff]
        %v1560 = vld [vmem:[%s3 + $0x180] sm:$0xff]
        %v1561 = vld [vmem:[%s3 + $0x188] sm:$0xff]
        %v1562 = vld [vmem:[%s3 + $0x190] sm:$0xff]
        %v1563 = vld [vmem:[%s3 + $0x198] sm:$0xff]
        %v1564 = vld [vmem:[%s3 + $0x1a0] sm:$0xff]
        %v1565 = vld [vmem:[%s3 + $0x1a8] sm:$0xff]
        %v1566 = vld [vmem:[%s3 + $0x1b0] sm:$0xff]
        %v1567 = vld [vmem:[%s3 + $0x1b8] sm:$0xff]
        %v1568 = vld [vmem:[%s3 + $0x1c0] sm:$0xff]
        %v1569 = vld [vmem:[%s3 + $0x1c8] sm:$0xff]
        %v1570 = vld [vmem:[%s3 + $0x1d0] sm:$0xff]
        %v1571 = vld [vmem:[%s3 + $0x1d8] sm:$0xff]
        %v1572 = vld [vmem:[%s3 + $0x1e0] sm:$0xff]
        %v1573 = vld [vmem:[%s3 + $0x1e8] sm:$0xff]
        %v1574 = vld [vmem:[%s3 + $0x1f0] sm:$0xff]
        %v1575 = vld [vmem:[%s3 + $0x1f8] sm:$0xff]
        %v1576 = vpack.c.bf16 %v1386, %v1384
        %v1577 = vpack.c.bf16 %v1387, %v1385
        %v1578 = vpack.c.bf16 %v1390, %v1388
        %v1579 = vpack.c.bf16 %v1391, %v1389
        %v1580 = vpack.c.bf16 %v1394, %v1392
        %v1581 = vpack.c.bf16 %v1395, %v1393
        %v1582 = vpack.c.bf16 %v1398, %v1396
        %v1583 = vpack.c.bf16 %v1399, %v1397
        %v1584 = vpack.c.bf16 %v1402, %v1400
        %v1585 = vpack.c.bf16 %v1403, %v1401
        %v1586 = vpack.c.bf16 %v1406, %v1404
        %v1587 = vpack.c.bf16 %v1407, %v1405
        %v1588 = vpack.c.bf16 %v1410, %v1408
        %v1589 = vpack.c.bf16 %v1411, %v1409
        %v1590 = vpack.c.bf16 %v1414, %v1412
        %v1591 = vpack.c.bf16 %v1415, %v1413
        %v1592 = vpack.c.bf16 %v1418, %v1416
        %v1593 = vpack.c.bf16 %v1419, %v1417
        %v1594 = vpack.c.bf16 %v1422, %v1420
        %v1595 = vpack.c.bf16 %v1423, %v1421
        %v1596 = vpack.c.bf16 %v1426, %v1424
        %v1597 = vpack.c.bf16 %v1427, %v1425
        %v1598 = vpack.c.bf16 %v1430, %v1428
        %v1599 = vpack.c.bf16 %v1431, %v1429
        %v1600 = vpack.c.bf16 %v1434, %v1432
        %v1601 = vpack.c.bf16 %v1435, %v1433
        %v1602 = vpack.c.bf16 %v1438, %v1436
        %v1603 = vpack.c.bf16 %v1439, %v1437
        %v1604 = vpack.c.bf16 %v1442, %v1440
        %v1605 = vpack.c.bf16 %v1443, %v1441
        %v1606 = vpack.c.bf16 %v1446, %v1444
        %v1607 = vpack.c.bf16 %v1447, %v1445
        %v1608 = vpack.c.bf16 %v1450, %v1448
        %v1609 = vpack.c.bf16 %v1451, %v1449
        %v1610 = vpack.c.bf16 %v1454, %v1452
        %v1611 = vpack.c.bf16 %v1455, %v1453
        %v1612 = vpack.c.bf16 %v1458, %v1456
        %v1613 = vpack.c.bf16 %v1459, %v1457
        %v1614 = vpack.c.bf16 %v1462, %v1460
        %v1615 = vpack.c.bf16 %v1463, %v1461
        %v1616 = vpack.c.bf16 %v1466, %v1464
        %v1617 = vpack.c.bf16 %v1467, %v1465
        %v1618 = vpack.c.bf16 %v1470, %v1468
        %v1619 = vpack.c.bf16 %v1471, %v1469
        %v1620 = vpack.c.bf16 %v1474, %v1472
        %v1621 = vpack.c.bf16 %v1475, %v1473
        %v1622 = vpack.c.bf16 %v1478, %v1476
        %v1623 = vpack.c.bf16 %v1479, %v1477
        %v1624 = vpack.c.bf16 %v1482, %v1480
        %v1625 = vpack.c.bf16 %v1483, %v1481
        %v1626 = vpack.c.bf16 %v1486, %v1484
        %v1627 = vpack.c.bf16 %v1487, %v1485
        %v1628 = vpack.c.bf16 %v1490, %v1488
        %v1629 = vpack.c.bf16 %v1491, %v1489
        %v1630 = vpack.c.bf16 %v1494, %v1492
        %v1631 = vpack.c.bf16 %v1495, %v1493
        %v1632 = vpack.c.bf16 %v1498, %v1496
        %v1633 = vpack.c.bf16 %v1499, %v1497
        %v1634 = vpack.c.bf16 %v1502, %v1500
        %v1635 = vpack.c.bf16 %v1503, %v1501
        %v1636 = vpack.c.bf16 %v1506, %v1504
        %v1637 = vpack.c.bf16 %v1507, %v1505
        %v1638 = vpack.c.bf16 %v1510, %v1508
        %v1639 = vpack.c.bf16 %v1511, %v1509
        %v1640 = vld [vmem:[%s4] sm:$0xff]
        %v1641 = vld [vmem:[%s4 + $0x8] sm:$0xff]
        %v1642 = vld [vmem:[%s4 + $0x10] sm:$0xff]
        %v1643 = vld [vmem:[%s4 + $0x18] sm:$0xff]
        %v1644 = vld [vmem:[%s4 + $0x20] sm:$0xff]
        %v1645 = vld [vmem:[%s4 + $0x28] sm:$0xff]
        %v1646 = vld [vmem:[%s4 + $0x30] sm:$0xff]
        %v1647 = vld [vmem:[%s4 + $0x38] sm:$0xff]
        %v1648 = vld [vmem:[%s4 + $0x40] sm:$0xff]
        %v1649 = vld [vmem:[%s4 + $0x48] sm:$0xff]
        %v1650 = vld [vmem:[%s4 + $0x50] sm:$0xff]
        %v1651 = vld [vmem:[%s4 + $0x58] sm:$0xff]
        %v1652 = vld [vmem:[%s4 + $0x60] sm:$0xff]
        %v1653 = vld [vmem:[%s4 + $0x68] sm:$0xff]
        %v1654 = vld [vmem:[%s4 + $0x70] sm:$0xff]
        %v1655 = vld [vmem:[%s4 + $0x78] sm:$0xff]
        %v1656 = vld [vmem:[%s4 + $0x80] sm:$0xff]
        %v1657 = vld [vmem:[%s4 + $0x88] sm:$0xff]
        %v1658 = vld [vmem:[%s4 + $0x90] sm:$0xff]
        %v1659 = vld [vmem:[%s4 + $0x98] sm:$0xff]
        %v1660 = vld [vmem:[%s4 + $0xa0] sm:$0xff]
        %v1661 = vld [vmem:[%s4 + $0xa8] sm:$0xff]
        %v1662 = vld [vmem:[%s4 + $0xb0] sm:$0xff]
        %v1663 = vld [vmem:[%s4 + $0xb8] sm:$0xff]
        %v1664 = vld [vmem:[%s4 + $0xc0] sm:$0xff]
        %v1665 = vld [vmem:[%s4 + $0xc8] sm:$0xff]
        %v1666 = vld [vmem:[%s4 + $0xd0] sm:$0xff]
        %v1667 = vld [vmem:[%s4 + $0xd8] sm:$0xff]
        %v1668 = vld [vmem:[%s4 + $0xe0] sm:$0xff]
        %v1669 = vld [vmem:[%s4 + $0xe8] sm:$0xff]
        %v1670 = vld [vmem:[%s4 + $0xf0] sm:$0xff]
        %v1671 = vld [vmem:[%s4 + $0xf8] sm:$0xff]
        %1673 = vset.pattern.permute.xlu0 0
        %1674 = vperm.xlu0 %1673, %v1640
        %v1675 = vpop.permute.xlu0 %1674
        %1678 = vset.pattern.permute.xlu0 0
        %1679 = vperm.xlu0 %1678, %v1641
        %v1680 = vpop.permute.xlu0 %1679
        %1683 = vset.pattern.permute.xlu0 0
        %1684 = vperm.xlu0 %1683, %v1642
        %v1685 = vpop.permute.xlu0 %1684
        %1688 = vset.pattern.permute.xlu0 0
        %1689 = vperm.xlu0 %1688, %v1643
        %v1690 = vpop.permute.xlu0 %1689
        %1693 = vset.pattern.permute.xlu0 0
        %1694 = vperm.xlu0 %1693, %v1644
        %v1695 = vpop.permute.xlu0 %1694
        %1698 = vset.pattern.permute.xlu0 0
        %1699 = vperm.xlu0 %1698, %v1645
        %v1700 = vpop.permute.xlu0 %1699
        %1703 = vset.pattern.permute.xlu0 0
        %1704 = vperm.xlu0 %1703, %v1646
        %v1705 = vpop.permute.xlu0 %1704
        %1708 = vset.pattern.permute.xlu0 0
        %1709 = vperm.xlu0 %1708, %v1647
        %v1710 = vpop.permute.xlu0 %1709
        %1713 = vset.pattern.permute.xlu0 0
        %1714 = vperm.xlu0 %1713, %v1648
        %v1715 = vpop.permute.xlu0 %1714
        %1718 = vset.pattern.permute.xlu0 0
        %1719 = vperm.xlu0 %1718, %v1649
        %v1720 = vpop.permute.xlu0 %1719
        %1723 = vset.pattern.permute.xlu0 0
        %1724 = vperm.xlu0 %1723, %v1650
        %v1725 = vpop.permute.xlu0 %1724
        %1728 = vset.pattern.permute.xlu0 0
        %1729 = vperm.xlu0 %1728, %v1651
        %v1730 = vpop.permute.xlu0 %1729
        %1733 = vset.pattern.permute.xlu0 0
        %1734 = vperm.xlu0 %1733, %v1652
        %v1735 = vpop.permute.xlu0 %1734
        %1738 = vset.pattern.permute.xlu0 0
        %1739 = vperm.xlu0 %1738, %v1653
        %v1740 = vpop.permute.xlu0 %1739
        %1743 = vset.pattern.permute.xlu0 0
        %1744 = vperm.xlu0 %1743, %v1654
        %v1745 = vpop.permute.xlu0 %1744
        %1748 = vset.pattern.permute.xlu0 0
        %1749 = vperm.xlu0 %1748, %v1655
        %v1750 = vpop.permute.xlu0 %1749
        %1753 = vset.pattern.permute.xlu0 0
        %1754 = vperm.xlu0 %1753, %v1656
        %v1755 = vpop.permute.xlu0 %1754
        %1758 = vset.pattern.permute.xlu0 0
        %1759 = vperm.xlu0 %1758, %v1657
        %v1760 = vpop.permute.xlu0 %1759
        %1763 = vset.pattern.permute.xlu0 0
        %1764 = vperm.xlu0 %1763, %v1658
        %v1765 = vpop.permute.xlu0 %1764
        %1768 = vset.pattern.permute.xlu0 0
        %1769 = vperm.xlu0 %1768, %v1659
        %v1770 = vpop.permute.xlu0 %1769
        %1773 = vset.pattern.permute.xlu0 0
        %1774 = vperm.xlu0 %1773, %v1660
        %v1775 = vpop.permute.xlu0 %1774
        %1778 = vset.pattern.permute.xlu0 0
        %1779 = vperm.xlu0 %1778, %v1661
        %v1780 = vpop.permute.xlu0 %1779
        %1783 = vset.pattern.permute.xlu0 0
        %1784 = vperm.xlu0 %1783, %v1662
        %v1785 = vpop.permute.xlu0 %1784
        %1788 = vset.pattern.permute.xlu0 0
        %1789 = vperm.xlu0 %1788, %v1663
        %v1790 = vpop.permute.xlu0 %1789
        %1793 = vset.pattern.permute.xlu0 0
        %1794 = vperm.xlu0 %1793, %v1664
        %v1795 = vpop.permute.xlu0 %1794
        %1798 = vset.pattern.permute.xlu0 0
        %1799 = vperm.xlu0 %1798, %v1665
        %v1800 = vpop.permute.xlu0 %1799
        %1803 = vset.pattern.permute.xlu0 0
        %1804 = vperm.xlu0 %1803, %v1666
        %v1805 = vpop.permute.xlu0 %1804
        %1808 = vset.pattern.permute.xlu0 0
        %1809 = vperm.xlu0 %1808, %v1667
        %v1810 = vpop.permute.xlu0 %1809
        %1813 = vset.pattern.permute.xlu0 0
        %1814 = vperm.xlu0 %1813, %v1668
        %v1815 = vpop.permute.xlu0 %1814
        %1818 = vset.pattern.permute.xlu0 0
        %1819 = vperm.xlu0 %1818, %v1669
        %v1820 = vpop.permute.xlu0 %1819
        %1823 = vset.pattern.permute.xlu0 0
        %1824 = vperm.xlu0 %1823, %v1670
        %v1825 = vpop.permute.xlu0 %1824
        %1828 = vset.pattern.permute.xlu0 0
        %1829 = vperm.xlu0 %1828, %v1671
        %v1830 = vpop.permute.xlu0 %1829
        %v1896 = vunpack.c.l.b16 %v1512
        %v1897 = vunpack.c.h.b16 %v1512
        %v1898 = vunpack.c.l.b16 %v1513
        %v1899 = vunpack.c.h.b16 %v1513
        %v1900 = vunpack.c.l.b16 %v1514
        %v1901 = vunpack.c.h.b16 %v1514
        %v1902 = vunpack.c.l.b16 %v1515
        %v1903 = vunpack.c.h.b16 %v1515
        %v1904 = vunpack.c.l.b16 %v1516
        %v1905 = vunpack.c.h.b16 %v1516
        %v1906 = vunpack.c.l.b16 %v1517
        %v1907 = vunpack.c.h.b16 %v1517
        %v1908 = vunpack.c.l.b16 %v1518
        %v1909 = vunpack.c.h.b16 %v1518
        %v1910 = vunpack.c.l.b16 %v1519
        %v1911 = vunpack.c.h.b16 %v1519
        %v1912 = vunpack.c.l.b16 %v1520
        %v1913 = vunpack.c.h.b16 %v1520
        %v1914 = vunpack.c.l.b16 %v1521
        %v1915 = vunpack.c.h.b16 %v1521
        %v1916 = vunpack.c.l.b16 %v1522
        %v1917 = vunpack.c.h.b16 %v1522
        %v1918 = vunpack.c.l.b16 %v1523
        %v1919 = vunpack.c.h.b16 %v1523
        %v1920 = vunpack.c.l.b16 %v1524
        %v1921 = vunpack.c.h.b16 %v1524
        %v1922 = vunpack.c.l.b16 %v1525
        %v1923 = vunpack.c.h.b16 %v1525
        %v1924 = vunpack.c.l.b16 %v1526
        %v1925 = vunpack.c.h.b16 %v1526
        %v1926 = vunpack.c.l.b16 %v1527
        %v1927 = vunpack.c.h.b16 %v1527
        %v1928 = vunpack.c.l.b16 %v1528
        %v1929 = vunpack.c.h.b16 %v1528
        %v1930 = vunpack.c.l.b16 %v1529
        %v1931 = vunpack.c.h.b16 %v1529
        %v1932 = vunpack.c.l.b16 %v1530
        %v1933 = vunpack.c.h.b16 %v1530
        %v1934 = vunpack.c.l.b16 %v1531
        %v1935 = vunpack.c.h.b16 %v1531
        %v1936 = vunpack.c.l.b16 %v1532
        %v1937 = vunpack.c.h.b16 %v1532
        %v1938 = vunpack.c.l.b16 %v1533
        %v1939 = vunpack.c.h.b16 %v1533
        %v1940 = vunpack.c.l.b16 %v1534
        %v1941 = vunpack.c.h.b16 %v1534
        %v1942 = vunpack.c.l.b16 %v1535
        %v1943 = vunpack.c.h.b16 %v1535
        %v1944 = vunpack.c.l.b16 %v1536
        %v1945 = vunpack.c.h.b16 %v1536
        %v1946 = vunpack.c.l.b16 %v1537
        %v1947 = vunpack.c.h.b16 %v1537
        %v1948 = vunpack.c.l.b16 %v1538
        %v1949 = vunpack.c.h.b16 %v1538
        %v1950 = vunpack.c.l.b16 %v1539
        %v1951 = vunpack.c.h.b16 %v1539
        %v1952 = vunpack.c.l.b16 %v1540
        %v1953 = vunpack.c.h.b16 %v1540
        %v1954 = vunpack.c.l.b16 %v1541
        %v1955 = vunpack.c.h.b16 %v1541
        %v1956 = vunpack.c.l.b16 %v1542
        %v1957 = vunpack.c.h.b16 %v1542
        %v1958 = vunpack.c.l.b16 %v1543
        %v1959 = vunpack.c.h.b16 %v1543
        %v1960 = vunpack.c.l.b16 %v1544
        %v1961 = vunpack.c.h.b16 %v1544
        %v1962 = vunpack.c.l.b16 %v1545
        %v1963 = vunpack.c.h.b16 %v1545
        %v1964 = vunpack.c.l.b16 %v1546
        %v1965 = vunpack.c.h.b16 %v1546
        %v1966 = vunpack.c.l.b16 %v1547
        %v1967 = vunpack.c.h.b16 %v1547
        %v1968 = vunpack.c.l.b16 %v1548
        %v1969 = vunpack.c.h.b16 %v1548
        %v1970 = vunpack.c.l.b16 %v1549
        %v1971 = vunpack.c.h.b16 %v1549
        %v1972 = vunpack.c.l.b16 %v1550
        %v1973 = vunpack.c.h.b16 %v1550
        %v1974 = vunpack.c.l.b16 %v1551
        %v1975 = vunpack.c.h.b16 %v1551
        %v1976 = vunpack.c.l.b16 %v1552
        %v1977 = vunpack.c.h.b16 %v1552
        %v1978 = vunpack.c.l.b16 %v1553
        %v1979 = vunpack.c.h.b16 %v1553
        %v1980 = vunpack.c.l.b16 %v1554
        %v1981 = vunpack.c.h.b16 %v1554
        %v1982 = vunpack.c.l.b16 %v1555
        %v1983 = vunpack.c.h.b16 %v1555
        %v1984 = vunpack.c.l.b16 %v1556
        %v1985 = vunpack.c.h.b16 %v1556
        %v1986 = vunpack.c.l.b16 %v1557
        %v1987 = vunpack.c.h.b16 %v1557
        %v1988 = vunpack.c.l.b16 %v1558
        %v1989 = vunpack.c.h.b16 %v1558
        %v1990 = vunpack.c.l.b16 %v1559
        %v1991 = vunpack.c.h.b16 %v1559
        %v1992 = vunpack.c.l.b16 %v1560
        %v1993 = vunpack.c.h.b16 %v1560
        %v1994 = vunpack.c.l.b16 %v1561
        %v1995 = vunpack.c.h.b16 %v1561
        %v1996 = vunpack.c.l.b16 %v1562
        %v1997 = vunpack.c.h.b16 %v1562
        %v1998 = vunpack.c.l.b16 %v1563
        %v1999 = vunpack.c.h.b16 %v1563
        %v2000 = vunpack.c.l.b16 %v1564
        %v2001 = vunpack.c.h.b16 %v1564
        %v2002 = vunpack.c.l.b16 %v1565
        %v2003 = vunpack.c.h.b16 %v1565
        %v2004 = vunpack.c.l.b16 %v1566
        %v2005 = vunpack.c.h.b16 %v1566
        %v2006 = vunpack.c.l.b16 %v1567
        %v2007 = vunpack.c.h.b16 %v1567
        %v2008 = vunpack.c.l.b16 %v1568
        %v2009 = vunpack.c.h.b16 %v1568
        %v2010 = vunpack.c.l.b16 %v1569
        %v2011 = vunpack.c.h.b16 %v1569
        %v2012 = vunpack.c.l.b16 %v1570
        %v2013 = vunpack.c.h.b16 %v1570
        %v2014 = vunpack.c.l.b16 %v1571
        %v2015 = vunpack.c.h.b16 %v1571
        %v2016 = vunpack.c.l.b16 %v1572
        %v2017 = vunpack.c.h.b16 %v1572
        %v2018 = vunpack.c.l.b16 %v1573
        %v2019 = vunpack.c.h.b16 %v1573
        %v2020 = vunpack.c.l.b16 %v1574
        %v2021 = vunpack.c.h.b16 %v1574
        %v2022 = vunpack.c.l.b16 %v1575
        %v2023 = vunpack.c.h.b16 %v1575
        %v2024 = vpack.c.b16 %v1900, %v1896
        %v2025 = vpack.c.b16 %v1901, %v1897
        %v2026 = vpack.c.b16 %v1902, %v1898
        %v2027 = vpack.c.b16 %v1903, %v1899
        %v2028 = vpack.c.b16 %v1908, %v1904
        %v2029 = vpack.c.b16 %v1909, %v1905
        %v2030 = vpack.c.b16 %v1910, %v1906
        %v2031 = vpack.c.b16 %v1911, %v1907
        %v2032 = vpack.c.b16 %v1916, %v1912
        %v2033 = vpack.c.b16 %v1917, %v1913
        %v2034 = vpack.c.b16 %v1918, %v1914
        %v2035 = vpack.c.b16 %v1919, %v1915
        %v2036 = vpack.c.b16 %v1924, %v1920
        %v2037 = vpack.c.b16 %v1925, %v1921
        %v2038 = vpack.c.b16 %v1926, %v1922
        %v2039 = vpack.c.b16 %v1927, %v1923
        %v2040 = vpack.c.b16 %v1932, %v1928
        %v2041 = vpack.c.b16 %v1933, %v1929
        %v2042 = vpack.c.b16 %v1934, %v1930
        %v2043 = vpack.c.b16 %v1935, %v1931
        %v2044 = vpack.c.b16 %v1940, %v1936
        %v2045 = vpack.c.b16 %v1941, %v1937
        %v2046 = vpack.c.b16 %v1942, %v1938
        %v2047 = vpack.c.b16 %v1943, %v1939
        %v2048 = vpack.c.b16 %v1948, %v1944
        %v2049 = vpack.c.b16 %v1949, %v1945
        %v2050 = vpack.c.b16 %v1950, %v1946
        %v2051 = vpack.c.b16 %v1951, %v1947
        %v2052 = vpack.c.b16 %v1956, %v1952
        %v2053 = vpack.c.b16 %v1957, %v1953
        %v2054 = vpack.c.b16 %v1958, %v1954
        %v2055 = vpack.c.b16 %v1959, %v1955
        %v2056 = vpack.c.b16 %v1964, %v1960
        %v2057 = vpack.c.b16 %v1965, %v1961
        %v2058 = vpack.c.b16 %v1966, %v1962
        %v2059 = vpack.c.b16 %v1967, %v1963
        %v2060 = vpack.c.b16 %v1972, %v1968
        %v2061 = vpack.c.b16 %v1973, %v1969
        %v2062 = vpack.c.b16 %v1974, %v1970
        %v2063 = vpack.c.b16 %v1975, %v1971
        %v2064 = vpack.c.b16 %v1980, %v1976
        %v2065 = vpack.c.b16 %v1981, %v1977
        %v2066 = vpack.c.b16 %v1982, %v1978
        %v2067 = vpack.c.b16 %v1983, %v1979
        %v2068 = vpack.c.b16 %v1988, %v1984
        %v2069 = vpack.c.b16 %v1989, %v1985
        %v2070 = vpack.c.b16 %v1990, %v1986
        %v2071 = vpack.c.b16 %v1991, %v1987
        %v2072 = vpack.c.b16 %v1996, %v1992
        %v2073 = vpack.c.b16 %v1997, %v1993
        %v2074 = vpack.c.b16 %v1998, %v1994
        %v2075 = vpack.c.b16 %v1999, %v1995
        %v2076 = vpack.c.b16 %v2004, %v2000
        %v2077 = vpack.c.b16 %v2005, %v2001
        %v2078 = vpack.c.b16 %v2006, %v2002
        %v2079 = vpack.c.b16 %v2007, %v2003
        %v2080 = vpack.c.b16 %v2012, %v2008
        %v2081 = vpack.c.b16 %v2013, %v2009
        %v2082 = vpack.c.b16 %v2014, %v2010
        %v2083 = vpack.c.b16 %v2015, %v2011
        %v2084 = vpack.c.b16 %v2020, %v2016
        %v2085 = vpack.c.b16 %v2021, %v2017
        %v2086 = vpack.c.b16 %v2022, %v2018
        %v2087 = vpack.c.b16 %v2023, %v2019
        %2152 = vmatprep.subr.bf16.mxu0 %v1591
        %2153 = vmatpush1.bf16.msra.mxu0 %v1590
        %2154 = vmatprep.subr.bf16.mxu0 %v1589
        %2155 = vmatpush1.bf16.msra.mxu0 %v1588
        %2156 = vmatprep.subr.bf16.mxu0 %v1587
        %2157 = vmatpush1.bf16.msra.mxu0 %v1586
        %2158 = vmatprep.subr.bf16.mxu0 %v1585
        %2159 = vmatpush1.bf16.msra.mxu0 %v1584
        %2160 = vmatprep.subr.bf16.mxu0 %v1583
        %2161 = vmatpush1.bf16.msra.mxu0 %v1582
        %2162 = vmatprep.subr.bf16.mxu0 %v1581
        %2163 = vmatpush1.bf16.msra.mxu0 %v1580
        %2164 = vmatprep.subr.bf16.mxu0 %v1579
        %2165 = vmatpush1.bf16.msra.mxu0 %v1578
        %2166 = vmatprep.subr.bf16.mxu0 %v1577
        %2167 = vmatpush1.bf16.msra.mxu0 %v1576
        %2168 = vmatprep.subr.bf16.mxu0 %v1607
        %2169 = vmatpush2.bf16.msra.mxu0 %v1606
        %2170 = vmatprep.subr.bf16.mxu0 %v1605
        %2171 = vmatpush2.bf16.msra.mxu0 %v1604
        %2172 = vmatprep.subr.bf16.mxu0 %v1603
        %2173 = vmatpush2.bf16.msra.mxu0 %v1602
        %2174 = vmatprep.subr.bf16.mxu0 %v1601
        %2175 = vmatpush2.bf16.msra.mxu0 %v1600
        %2176 = vmatprep.subr.bf16.mxu0 %v1599
        %2177 = vmatpush2.bf16.msra.mxu0 %v1598
        %2178 = vmatprep.subr.bf16.mxu0 %v1597
        %2179 = vmatpush2.bf16.msra.mxu0 %v1596
        %2180 = vmatprep.subr.bf16.mxu0 %v1595
        %2181 = vmatpush2.bf16.msra.mxu0 %v1594
        %2182 = vmatprep.subr.bf16.mxu0 %v1593
        %2183 = vmatpush2.bf16.msra.mxu0 %v1592
        %2184 = vmatprep.mubr.bf16.mxu0 %v2025
        %2185 = vmatmul.mubr.bf16.gmra.mxu0 %v2024
        %v2186 = vpop.f32.mrf.mxu0
        %v2187 = vadd.f32 %v1675, %v2186
        %v2188 = vpop.f32.mrf.mxu0
        %v2189 = vadd.f32 %v1675, %v2188
        %v2190 = vpop.f32.mrf.mxu0
        %v2191 = vadd.f32 %v1680, %v2190
        %v2192 = vpop.f32.mrf.mxu0
        %v2193 = vadd.f32 %v1680, %v2192
        %2194 = vmatprep.mubr.bf16.mxu0 %v2029
        %2195 = vmatmul.mubr.bf16.gmra.mxu0 %v2028
        %v2196 = vpop.f32.mrf.mxu0
        %v2197 = vadd.f32 %v1685, %v2196
        %v2198 = vpop.f32.mrf.mxu0
        %v2199 = vadd.f32 %v1685, %v2198
        %v2200 = vpop.f32.mrf.mxu0
        %v2201 = vadd.f32 %v1690, %v2200
        %v2202 = vpop.f32.mrf.mxu0
        %v2203 = vadd.f32 %v1690, %v2202
        %2204 = vmatprep.mubr.bf16.mxu0 %v2033
        %2205 = vmatmul.mubr.bf16.gmra.mxu0 %v2032
        %v2206 = vpop.f32.mrf.mxu0
        %v2207 = vadd.f32 %v1695, %v2206
        %v2208 = vpop.f32.mrf.mxu0
        %v2209 = vadd.f32 %v1695, %v2208
        %v2210 = vpop.f32.mrf.mxu0
        %v2211 = vadd.f32 %v1700, %v2210
        %v2212 = vpop.f32.mrf.mxu0
        %v2213 = vadd.f32 %v1700, %v2212
        %2214 = vmatprep.mubr.bf16.mxu0 %v2037
        %2215 = vmatmul.mubr.bf16.gmra.mxu0 %v2036
        %v2216 = vpop.f32.mrf.mxu0
        %v2217 = vadd.f32 %v1705, %v2216
        %v2218 = vpop.f32.mrf.mxu0
        %v2219 = vadd.f32 %v1705, %v2218
        %v2220 = vpop.f32.mrf.mxu0
        %v2221 = vadd.f32 %v1710, %v2220
        %v2222 = vpop.f32.mrf.mxu0
        %v2223 = vadd.f32 %v1710, %v2222
        %2224 = vmatprep.mubr.bf16.mxu0 %v2041
        %2225 = vmatmul.mubr.bf16.gmra.mxu0 %v2040
        %v2226 = vpop.f32.mrf.mxu0
        %v2227 = vadd.f32 %v1715, %v2226
        %v2228 = vpop.f32.mrf.mxu0
        %v2229 = vadd.f32 %v1715, %v2228
        %v2230 = vpop.f32.mrf.mxu0
        %v2231 = vadd.f32 %v1720, %v2230
        %v2232 = vpop.f32.mrf.mxu0
        %v2233 = vadd.f32 %v1720, %v2232
        %2234 = vmatprep.mubr.bf16.mxu0 %v2045
        %2235 = vmatmul.mubr.bf16.gmra.mxu0 %v2044
        %v2236 = vpop.f32.mrf.mxu0
        %v2237 = vadd.f32 %v1725, %v2236
        %v2238 = vpop.f32.mrf.mxu0
        %v2239 = vadd.f32 %v1725, %v2238
        %v2240 = vpop.f32.mrf.mxu0
        %v2241 = vadd.f32 %v1730, %v2240
        %v2242 = vpop.f32.mrf.mxu0
        %v2243 = vadd.f32 %v1730, %v2242
        %2244 = vmatprep.mubr.bf16.mxu0 %v2049
        %2245 = vmatmul.mubr.bf16.gmra.mxu0 %v2048
        %v2246 = vpop.f32.mrf.mxu0
        %v2247 = vadd.f32 %v1735, %v2246
        %v2248 = vpop.f32.mrf.mxu0
        %v2249 = vadd.f32 %v1735, %v2248
        %v2250 = vpop.f32.mrf.mxu0
        %v2251 = vadd.f32 %v1740, %v2250
        %v2252 = vpop.f32.mrf.mxu0
        %v2253 = vadd.f32 %v1740, %v2252
        %2254 = vmatprep.mubr.bf16.mxu0 %v2053
        %2255 = vmatmul.mubr.bf16.gmra.mxu0 %v2052
        %v2256 = vpop.f32.mrf.mxu0
        %v2257 = vadd.f32 %v1745, %v2256
        %v2258 = vpop.f32.mrf.mxu0
        %v2259 = vadd.f32 %v1745, %v2258
        %v2260 = vpop.f32.mrf.mxu0
        %v2261 = vadd.f32 %v1750, %v2260
        %v2262 = vpop.f32.mrf.mxu0
        %v2263 = vadd.f32 %v1750, %v2262
        %2264 = vmatprep.mubr.bf16.mxu0 %v2057
        %2265 = vmatmul.mubr.bf16.gmra.mxu0 %v2056
        %v2266 = vpop.f32.mrf.mxu0
        %v2267 = vadd.f32 %v1755, %v2266
        %v2268 = vpop.f32.mrf.mxu0
        %v2269 = vadd.f32 %v1755, %v2268
        %v2270 = vpop.f32.mrf.mxu0
        %v2271 = vadd.f32 %v1760, %v2270
        %v2272 = vpop.f32.mrf.mxu0
        %v2273 = vadd.f32 %v1760, %v2272
        %2274 = vmatprep.mubr.bf16.mxu0 %v2061
        %2275 = vmatmul.mubr.bf16.gmra.mxu0 %v2060
        %v2276 = vpop.f32.mrf.mxu0
        %v2277 = vadd.f32 %v1765, %v2276
        %v2278 = vpop.f32.mrf.mxu0
        %v2279 = vadd.f32 %v1765, %v2278
        %v2280 = vpop.f32.mrf.mxu0
        %v2281 = vadd.f32 %v1770, %v2280
        %v2282 = vpop.f32.mrf.mxu0
        %v2283 = vadd.f32 %v1770, %v2282
        %2284 = vmatprep.mubr.bf16.mxu0 %v2065
        %2285 = vmatmul.mubr.bf16.gmra.mxu0 %v2064
        %v2286 = vpop.f32.mrf.mxu0
        %v2287 = vadd.f32 %v1775, %v2286
        %v2288 = vpop.f32.mrf.mxu0
        %v2289 = vadd.f32 %v1775, %v2288
        %v2290 = vpop.f32.mrf.mxu0
        %v2291 = vadd.f32 %v1780, %v2290
        %v2292 = vpop.f32.mrf.mxu0
        %v2293 = vadd.f32 %v1780, %v2292
        %2294 = vmatprep.mubr.bf16.mxu0 %v2069
        %2295 = vmatmul.mubr.bf16.gmra.mxu0 %v2068
        %v2296 = vpop.f32.mrf.mxu0
        %v2297 = vadd.f32 %v1785, %v2296
        %v2298 = vpop.f32.mrf.mxu0
        %v2299 = vadd.f32 %v1785, %v2298
        %v2300 = vpop.f32.mrf.mxu0
        %v2301 = vadd.f32 %v1790, %v2300
        %v2302 = vpop.f32.mrf.mxu0
        %v2303 = vadd.f32 %v1790, %v2302
        %2304 = vmatprep.mubr.bf16.mxu0 %v2073
        %2305 = vmatmul.mubr.bf16.gmra.mxu0 %v2072
        %v2306 = vpop.f32.mrf.mxu0
        %v2307 = vadd.f32 %v1795, %v2306
        %v2308 = vpop.f32.mrf.mxu0
        %v2309 = vadd.f32 %v1795, %v2308
        %v2310 = vpop.f32.mrf.mxu0
        %v2311 = vadd.f32 %v1800, %v2310
        %v2312 = vpop.f32.mrf.mxu0
        %v2313 = vadd.f32 %v1800, %v2312
        %2314 = vmatprep.mubr.bf16.mxu0 %v2077
        %2315 = vmatmul.mubr.bf16.gmra.mxu0 %v2076
        %v2316 = vpop.f32.mrf.mxu0
        %v2317 = vadd.f32 %v1805, %v2316
        %v2318 = vpop.f32.mrf.mxu0
        %v2319 = vadd.f32 %v1805, %v2318
        %v2320 = vpop.f32.mrf.mxu0
        %v2321 = vadd.f32 %v1810, %v2320
        %v2322 = vpop.f32.mrf.mxu0
        %v2323 = vadd.f32 %v1810, %v2322
        %2324 = vmatprep.mubr.bf16.mxu0 %v2081
        %2325 = vmatmul.mubr.bf16.gmra.mxu0 %v2080
        %v2326 = vpop.f32.mrf.mxu0
        %v2327 = vadd.f32 %v1815, %v2326
        %v2328 = vpop.f32.mrf.mxu0
        %v2329 = vadd.f32 %v1815, %v2328
        %v2330 = vpop.f32.mrf.mxu0
        %v2331 = vadd.f32 %v1820, %v2330
        %v2332 = vpop.f32.mrf.mxu0
        %v2333 = vadd.f32 %v1820, %v2332
        %2334 = vmatprep.mubr.bf16.mxu0 %v2085
        %2335 = vmatmul.mubr.bf16.gmra.mxu0 %v2084
        %v2336 = vpop.f32.mrf.mxu0
        %v2337 = vadd.f32 %v1825, %v2336
        %v2338 = vpop.f32.mrf.mxu0
        %v2339 = vadd.f32 %v1825, %v2338
        %v2340 = vpop.f32.mrf.mxu0
        %v2341 = vadd.f32 %v1830, %v2340
        %v2342 = vpop.f32.mrf.mxu0
        %v2343 = vadd.f32 %v1830, %v2342
        %2344 = vdwg.mxu0
        %2345 = vmatprep.subr.bf16.mxu0 %v1623
        %2346 = vmatpush1.bf16.msra.mxu0 %v1622
        %2347 = vmatprep.subr.bf16.mxu0 %v1621
        %2348 = vmatpush1.bf16.msra.mxu0 %v1620
        %2349 = vmatprep.subr.bf16.mxu0 %v1619
        %2350 = vmatpush1.bf16.msra.mxu0 %v1618
        %2351 = vmatprep.subr.bf16.mxu0 %v1617
        %2352 = vmatpush1.bf16.msra.mxu0 %v1616
        %2353 = vmatprep.subr.bf16.mxu0 %v1615
        %2354 = vmatpush1.bf16.msra.mxu0 %v1614
        %2355 = vmatprep.subr.bf16.mxu0 %v1613
        %2356 = vmatpush1.bf16.msra.mxu0 %v1612
        %2357 = vmatprep.subr.bf16.mxu0 %v1611
        %2358 = vmatpush1.bf16.msra.mxu0 %v1610
        %2359 = vmatprep.subr.bf16.mxu0 %v1609
        %2360 = vmatpush1.bf16.msra.mxu0 %v1608
        %2361 = vmatprep.subr.bf16.mxu0 %v1639
        %2362 = vmatpush2.bf16.msra.mxu0 %v1638
        %2363 = vmatprep.subr.bf16.mxu0 %v1637
        %2364 = vmatpush2.bf16.msra.mxu0 %v1636
        %2365 = vmatprep.subr.bf16.mxu0 %v1635
        %2366 = vmatpush2.bf16.msra.mxu0 %v1634
        %2367 = vmatprep.subr.bf16.mxu0 %v1633
        %2368 = vmatpush2.bf16.msra.mxu0 %v1632
        %2369 = vmatprep.subr.bf16.mxu0 %v1631
        %2370 = vmatpush2.bf16.msra.mxu0 %v1630
        %2371 = vmatprep.subr.bf16.mxu0 %v1629
        %2372 = vmatpush2.bf16.msra.mxu0 %v1628
        %2373 = vmatprep.subr.bf16.mxu0 %v1627
        %2374 = vmatpush2.bf16.msra.mxu0 %v1626
        %2375 = vmatprep.subr.bf16.mxu0 %v1625
        %2376 = vmatpush2.bf16.msra.mxu0 %v1624
        %2377 = vmatprep.mubr.bf16.mxu0 %v2027
        %2378 = vmatmul.mubr.bf16.gmra.mxu0 %v2026
        %v2379 = vpop.f32.mrf.mxu0
        %v2380 = vadd.f32 %v2187, %v2379
        %v2381 = vpop.f32.mrf.mxu0
        %v2382 = vadd.f32 %v2189, %v2381
        %v2383 = vpop.f32.mrf.mxu0
        %v2384 = vadd.f32 %v2191, %v2383
        %v2385 = vpop.f32.mrf.mxu0
        %v2386 = vadd.f32 %v2193, %v2385
        %2387 = vmatprep.mubr.bf16.mxu0 %v2031
        %2388 = vmatmul.mubr.bf16.gmra.mxu0 %v2030
        %v2389 = vpop.f32.mrf.mxu0
        %v2390 = vadd.f32 %v2197, %v2389
        %v2391 = vpop.f32.mrf.mxu0
        %v2392 = vadd.f32 %v2199, %v2391
        %v2393 = vpop.f32.mrf.mxu0
        %v2394 = vadd.f32 %v2201, %v2393
        %v2395 = vpop.f32.mrf.mxu0
        %v2396 = vadd.f32 %v2203, %v2395
        %2397 = vmatprep.mubr.bf16.mxu0 %v2035
        %2398 = vmatmul.mubr.bf16.gmra.mxu0 %v2034
        %v2399 = vpop.f32.mrf.mxu0
        %v2400 = vadd.f32 %v2207, %v2399
        %v2401 = vpop.f32.mrf.mxu0
        %v2402 = vadd.f32 %v2209, %v2401
        %v2403 = vpop.f32.mrf.mxu0
        %v2404 = vadd.f32 %v2211, %v2403
        %v2405 = vpop.f32.mrf.mxu0
        %v2406 = vadd.f32 %v2213, %v2405
        %2407 = vmatprep.mubr.bf16.mxu0 %v2039
        %2408 = vmatmul.mubr.bf16.gmra.mxu0 %v2038
        %v2409 = vpop.f32.mrf.mxu0
        %v2410 = vadd.f32 %v2217, %v2409
        %v2411 = vpop.f32.mrf.mxu0
        %v2412 = vadd.f32 %v2219, %v2411
        %v2413 = vpop.f32.mrf.mxu0
        %v2414 = vadd.f32 %v2221, %v2413
        %v2415 = vpop.f32.mrf.mxu0
        %v2416 = vadd.f32 %v2223, %v2415
        %2417 = vmatprep.mubr.bf16.mxu0 %v2043
        %2418 = vmatmul.mubr.bf16.gmra.mxu0 %v2042
        %v2419 = vpop.f32.mrf.mxu0
        %v2420 = vadd.f32 %v2227, %v2419
        %v2421 = vpop.f32.mrf.mxu0
        %v2422 = vadd.f32 %v2229, %v2421
        %v2423 = vpop.f32.mrf.mxu0
        %v2424 = vadd.f32 %v2231, %v2423
        %v2425 = vpop.f32.mrf.mxu0
        %v2426 = vadd.f32 %v2233, %v2425
        %2427 = vmatprep.mubr.bf16.mxu0 %v2047
        %2428 = vmatmul.mubr.bf16.gmra.mxu0 %v2046
        %v2429 = vpop.f32.mrf.mxu0
        %v2430 = vadd.f32 %v2237, %v2429
        %v2431 = vpop.f32.mrf.mxu0
        %v2432 = vadd.f32 %v2239, %v2431
        %v2433 = vpop.f32.mrf.mxu0
        %v2434 = vadd.f32 %v2241, %v2433
        %v2435 = vpop.f32.mrf.mxu0
        %v2436 = vadd.f32 %v2243, %v2435
        %2437 = vmatprep.mubr.bf16.mxu0 %v2051
        %2438 = vmatmul.mubr.bf16.gmra.mxu0 %v2050
        %v2439 = vpop.f32.mrf.mxu0
        %v2440 = vadd.f32 %v2247, %v2439
        %v2441 = vpop.f32.mrf.mxu0
        %v2442 = vadd.f32 %v2249, %v2441
        %v2443 = vpop.f32.mrf.mxu0
        %v2444 = vadd.f32 %v2251, %v2443
        %v2445 = vpop.f32.mrf.mxu0
        %v2446 = vadd.f32 %v2253, %v2445
        %2447 = vmatprep.mubr.bf16.mxu0 %v2055
        %2448 = vmatmul.mubr.bf16.gmra.mxu0 %v2054
        %v2449 = vpop.f32.mrf.mxu0
        %v2450 = vadd.f32 %v2257, %v2449
        %v2451 = vpop.f32.mrf.mxu0
        %v2452 = vadd.f32 %v2259, %v2451
        %v2453 = vpop.f32.mrf.mxu0
        %v2454 = vadd.f32 %v2261, %v2453
        %v2455 = vpop.f32.mrf.mxu0
        %v2456 = vadd.f32 %v2263, %v2455
        %2457 = vmatprep.mubr.bf16.mxu0 %v2059
        %2458 = vmatmul.mubr.bf16.gmra.mxu0 %v2058
        %v2459 = vpop.f32.mrf.mxu0
        %v2460 = vadd.f32 %v2267, %v2459
        %v2461 = vpop.f32.mrf.mxu0
        %v2462 = vadd.f32 %v2269, %v2461
        %v2463 = vpop.f32.mrf.mxu0
        %v2464 = vadd.f32 %v2271, %v2463
        %v2465 = vpop.f32.mrf.mxu0
        %v2466 = vadd.f32 %v2273, %v2465
        %2467 = vmatprep.mubr.bf16.mxu0 %v2063
        %2468 = vmatmul.mubr.bf16.gmra.mxu0 %v2062
        %v2469 = vpop.f32.mrf.mxu0
        %v2470 = vadd.f32 %v2277, %v2469
        %v2471 = vpop.f32.mrf.mxu0
        %v2472 = vadd.f32 %v2279, %v2471
        %v2473 = vpop.f32.mrf.mxu0
        %v2474 = vadd.f32 %v2281, %v2473
        %v2475 = vpop.f32.mrf.mxu0
        %v2476 = vadd.f32 %v2283, %v2475
        %2477 = vmatprep.mubr.bf16.mxu0 %v2067
        %2478 = vmatmul.mubr.bf16.gmra.mxu0 %v2066
        %v2479 = vpop.f32.mrf.mxu0
        %v2480 = vadd.f32 %v2287, %v2479
        %v2481 = vpop.f32.mrf.mxu0
        %v2482 = vadd.f32 %v2289, %v2481
        %v2483 = vpop.f32.mrf.mxu0
        %v2484 = vadd.f32 %v2291, %v2483
        %v2485 = vpop.f32.mrf.mxu0
        %v2486 = vadd.f32 %v2293, %v2485
        %2487 = vmatprep.mubr.bf16.mxu0 %v2071
        %2488 = vmatmul.mubr.bf16.gmra.mxu0 %v2070
        %v2489 = vpop.f32.mrf.mxu0
        %v2490 = vadd.f32 %v2297, %v2489
        %v2491 = vpop.f32.mrf.mxu0
        %v2492 = vadd.f32 %v2299, %v2491
        %v2493 = vpop.f32.mrf.mxu0
        %v2494 = vadd.f32 %v2301, %v2493
        %v2495 = vpop.f32.mrf.mxu0
        %v2496 = vadd.f32 %v2303, %v2495
        %2497 = vmatprep.mubr.bf16.mxu0 %v2075
        %2498 = vmatmul.mubr.bf16.gmra.mxu0 %v2074
        %v2499 = vpop.f32.mrf.mxu0
        %v2500 = vadd.f32 %v2307, %v2499
        %v2501 = vpop.f32.mrf.mxu0
        %v2502 = vadd.f32 %v2309, %v2501
        %v2503 = vpop.f32.mrf.mxu0
        %v2504 = vadd.f32 %v2311, %v2503
        %v2505 = vpop.f32.mrf.mxu0
        %v2506 = vadd.f32 %v2313, %v2505
        %2507 = vmatprep.mubr.bf16.mxu0 %v2079
        %2508 = vmatmul.mubr.bf16.gmra.mxu0 %v2078
        %v2509 = vpop.f32.mrf.mxu0
        %v2510 = vadd.f32 %v2317, %v2509
        %v2511 = vpop.f32.mrf.mxu0
        %v2512 = vadd.f32 %v2319, %v2511
        %v2513 = vpop.f32.mrf.mxu0
        %v2514 = vadd.f32 %v2321, %v2513
        %v2515 = vpop.f32.mrf.mxu0
        %v2516 = vadd.f32 %v2323, %v2515
        %2517 = vmatprep.mubr.bf16.mxu0 %v2083
        %2518 = vmatmul.mubr.bf16.gmra.mxu0 %v2082
        %v2519 = vpop.f32.mrf.mxu0
        %v2520 = vadd.f32 %v2327, %v2519
        %v2521 = vpop.f32.mrf.mxu0
        %v2522 = vadd.f32 %v2329, %v2521
        %v2523 = vpop.f32.mrf.mxu0
        %v2524 = vadd.f32 %v2331, %v2523
        %v2525 = vpop.f32.mrf.mxu0
        %v2526 = vadd.f32 %v2333, %v2525
        %2527 = vmatprep.mubr.bf16.mxu0 %v2087
        %2528 = vmatmul.mubr.bf16.gmra.mxu0 %v2086
        %v2529 = vpop.f32.mrf.mxu0
        %v2530 = vadd.f32 %v2337, %v2529
        %v2531 = vpop.f32.mrf.mxu0
        %v2532 = vadd.f32 %v2339, %v2531
        %v2533 = vpop.f32.mrf.mxu0
        %v2534 = vadd.f32 %v2341, %v2533
        %v2535 = vpop.f32.mrf.mxu0
        %v2536 = vadd.f32 %v2343, %v2535
        %2537 = vdwg.mxu0
        %v2538 = vmax.f32 %v2380, 0.0
        %v2539 = vmax.f32 %v2382, 0.0
        %v2540 = vmax.f32 %v2384, 0.0
        %v2541 = vmax.f32 %v2386, 0.0
        %v2542 = vmax.f32 %v2390, 0.0
        %v2543 = vmax.f32 %v2392, 0.0
        %v2544 = vmax.f32 %v2394, 0.0
        %v2545 = vmax.f32 %v2396, 0.0
        %v2546 = vmax.f32 %v2400, 0.0
        %v2547 = vmax.f32 %v2402, 0.0
        %v2548 = vmax.f32 %v2404, 0.0
        %v2549 = vmax.f32 %v2406, 0.0
        %v2550 = vmax.f32 %v2410, 0.0
        %v2551 = vmax.f32 %v2412, 0.0
        %v2552 = vmax.f32 %v2414, 0.0
        %v2553 = vmax.f32 %v2416, 0.0
        %v2554 = vmax.f32 %v2420, 0.0
        %v2555 = vmax.f32 %v2422, 0.0
        %v2556 = vmax.f32 %v2424, 0.0
        %v2557 = vmax.f32 %v2426, 0.0
        %v2558 = vmax.f32 %v2430, 0.0
        %v2559 = vmax.f32 %v2432, 0.0
        %v2560 = vmax.f32 %v2434, 0.0
        %v2561 = vmax.f32 %v2436, 0.0
        %v2562 = vmax.f32 %v2440, 0.0
        %v2563 = vmax.f32 %v2442, 0.0
        %v2564 = vmax.f32 %v2444, 0.0
        %v2565 = vmax.f32 %v2446, 0.0
        %v2566 = vmax.f32 %v2450, 0.0
        %v2567 = vmax.f32 %v2452, 0.0
        %v2568 = vmax.f32 %v2454, 0.0
        %v2569 = vmax.f32 %v2456, 0.0
        %v2570 = vmax.f32 %v2460, 0.0
        %v2571 = vmax.f32 %v2462, 0.0
        %v2572 = vmax.f32 %v2464, 0.0
        %v2573 = vmax.f32 %v2466, 0.0
        %v2574 = vmax.f32 %v2470, 0.0
        %v2575 = vmax.f32 %v2472, 0.0
        %v2576 = vmax.f32 %v2474, 0.0
        %v2577 = vmax.f32 %v2476, 0.0
        %v2578 = vmax.f32 %v2480, 0.0
        %v2579 = vmax.f32 %v2482, 0.0
        %v2580 = vmax.f32 %v2484, 0.0
        %v2581 = vmax.f32 %v2486, 0.0
        %v2582 = vmax.f32 %v2490, 0.0
        %v2583 = vmax.f32 %v2492, 0.0
        %v2584 = vmax.f32 %v2494, 0.0
        %v2585 = vmax.f32 %v2496, 0.0
        %v2586 = vmax.f32 %v2500, 0.0
        %v2587 = vmax.f32 %v2502, 0.0
        %v2588 = vmax.f32 %v2504, 0.0
        %v2589 = vmax.f32 %v2506, 0.0
        %v2590 = vmax.f32 %v2510, 0.0
        %v2591 = vmax.f32 %v2512, 0.0
        %v2592 = vmax.f32 %v2514, 0.0
        %v2593 = vmax.f32 %v2516, 0.0
        %v2594 = vmax.f32 %v2520, 0.0
        %v2595 = vmax.f32 %v2522, 0.0
        %v2596 = vmax.f32 %v2524, 0.0
        %v2597 = vmax.f32 %v2526, 0.0
        %v2598 = vmax.f32 %v2530, 0.0
        %v2599 = vmax.f32 %v2532, 0.0
        %v2600 = vmax.f32 %v2534, 0.0
        %v2601 = vmax.f32 %v2536, 0.0
        %v2602 = vld [vmem:[%s5] sm:$0xff]
        %v2603 = vpack.c.bf16 %v2540, %v2538
        %v2604 = vpack.c.bf16 %v2541, %v2539
        %v2605 = vpack.c.bf16 %v2544, %v2542
        %v2606 = vpack.c.bf16 %v2545, %v2543
        %v2607 = vpack.c.bf16 %v2548, %v2546
        %v2608 = vpack.c.bf16 %v2549, %v2547
        %v2609 = vpack.c.bf16 %v2552, %v2550
        %v2610 = vpack.c.bf16 %v2553, %v2551
        %v2611 = vpack.c.bf16 %v2556, %v2554
        %v2612 = vpack.c.bf16 %v2557, %v2555
        %v2613 = vpack.c.bf16 %v2560, %v2558
        %v2614 = vpack.c.bf16 %v2561, %v2559
        %v2615 = vpack.c.bf16 %v2564, %v2562
        %v2616 = vpack.c.bf16 %v2565, %v2563
        %v2617 = vpack.c.bf16 %v2568, %v2566
        %v2618 = vpack.c.bf16 %v2569, %v2567
        %v2619 = vpack.c.bf16 %v2572, %v2570
        %v2620 = vpack.c.bf16 %v2573, %v2571
        %v2621 = vpack.c.bf16 %v2576, %v2574
        %v2622 = vpack.c.bf16 %v2577, %v2575
        %v2623 = vpack.c.bf16 %v2580, %v2578
        %v2624 = vpack.c.bf16 %v2581, %v2579
        %v2625 = vpack.c.bf16 %v2584, %v2582
        %v2626 = vpack.c.bf16 %v2585, %v2583
        %v2627 = vpack.c.bf16 %v2588, %v2586
        %v2628 = vpack.c.bf16 %v2589, %v2587
        %v2629 = vpack.c.bf16 %v2592, %v2590
        %v2630 = vpack.c.bf16 %v2593, %v2591
        %v2631 = vpack.c.bf16 %v2596, %v2594
        %v2632 = vpack.c.bf16 %v2597, %v2595
        %v2633 = vpack.c.bf16 %v2600, %v2598
        %v2634 = vpack.c.bf16 %v2601, %v2599
        %v2635 = vld [vmem:[%s6] sm:$0xff]
        %2637 = vset.pattern.permute.xlu0 0
        %2638 = vperm.xlu0 %2637, %v2635
        %v2639 = vpop.permute.xlu0 %2638
        %v2642 = vunpack.c.l.b16 %v2602
        %v2643 = vunpack.c.h.b16 %v2602
        %v2644 = vpack.c.b16 %v2642, %v2642
        %v2645 = vpack.c.b16 %v2643, %v2643
        %2648 = vmatprep.subr.bf16.mxu0 %v2618
        %2649 = vmatpush1.bf16.msra.mxu0 %v2617
        %2650 = vmatprep.subr.bf16.mxu0 %v2616
        %2651 = vmatpush1.bf16.msra.mxu0 %v2615
        %2652 = vmatprep.subr.bf16.mxu0 %v2614
        %2653 = vmatpush1.bf16.msra.mxu0 %v2613
        %2654 = vmatprep.subr.bf16.mxu0 %v2612
        %2655 = vmatpush1.bf16.msra.mxu0 %v2611
        %2656 = vmatprep.subr.bf16.mxu0 %v2610
        %2657 = vmatpush1.bf16.msra.mxu0 %v2609
        %2658 = vmatprep.subr.bf16.mxu0 %v2608
        %2659 = vmatpush1.bf16.msra.mxu0 %v2607
        %2660 = vmatprep.subr.bf16.mxu0 %v2606
        %2661 = vmatpush1.bf16.msra.mxu0 %v2605
        %2662 = vmatprep.subr.bf16.mxu0 %v2604
        %2663 = vmatpush1.bf16.msra.mxu0 %v2603
        %2664 = vmatprep.subr.bf16.mxu0 %v2634
        %2665 = vmatpush2.bf16.msra.mxu0 %v2633
        %2666 = vmatprep.subr.bf16.mxu0 %v2632
        %2667 = vmatpush2.bf16.msra.mxu0 %v2631
        %2668 = vmatprep.subr.bf16.mxu0 %v2630
        %2669 = vmatpush2.bf16.msra.mxu0 %v2629
        %2670 = vmatprep.subr.bf16.mxu0 %v2628
        %2671 = vmatpush2.bf16.msra.mxu0 %v2627
        %2672 = vmatprep.subr.bf16.mxu0 %v2626
        %2673 = vmatpush2.bf16.msra.mxu0 %v2625
        %2674 = vmatprep.subr.bf16.mxu0 %v2624
        %2675 = vmatpush2.bf16.msra.mxu0 %v2623
        %2676 = vmatprep.subr.bf16.mxu0 %v2622
        %2677 = vmatpush2.bf16.msra.mxu0 %v2621
        %2678 = vmatprep.subr.bf16.mxu0 %v2620
        %2679 = vmatpush2.bf16.msra.mxu0 %v2619
        %2680 = vmatprep.mubr.bf16.mxu0 %v2645
        %2681 = vmatmul.mubr.bf16.gmra.mxu0 %v2644
        %v2682 = vpop.f32.mrf.mxu0
        %v2683 = vadd.f32 %v2639, %v2682
        %v2684 = vpop.f32.mrf.mxu0
        %v2685 = vadd.f32 %v2639, %v2684
        %v2686 = vpop.f32.mrf.mxu0
        %v2687 = vpop.f32.mrf.mxu0
        %2688 = vdwg.mxu0
        %v2689 = vmax.f32 %v2683, 0.0
        %v2690 = vmax.f32 %v2685, 0.0
        %2691 = vst [vmem:[%s296] sm:$0xff] %v2689
        %2692 = vst [vmem:[%s296 + $0x8] sm:$0xff] %v2690
        %s2693 = sand.u32 %s197, 1
        %s2694 = scalar_lea.sflag [#allocation3], %s2693
        %s2695 = sand.u32 %s197, 1
        %s2696 = smul.addr %s2695, 16
        %s2697 = scalar_lea.vmem [#allocation2], %s2696
        // Predicated region
        $region49: #{tpu_custom_call.1} parent=47 // pred_check
          %p2698 = pneg %p207
        $region50: #{tpu_custom_call.1} parent=47 // pred_check_branch
          %2700 = sbr.rel (%p2698) target = $region52
        $region51: #{tpu_custom_call.1} parent=47 // pred_region
          %s2701 = smul.u32 2, %s26
          %s2703 = ssub.s32 256, 256
          %2704 = vsyncadd %s2694, %s2703
          %s2705 = smul.addr %s25, 2
          %s2706 = sadd.s32 %s2701, %s2705
          %s2707 = smul.addr %s2706, 128
          %s2708 = scalar_lea.hbm %s7, %s2707
          %s2710 = sshll.u32 %s2697, 4
          %s2711 = int_to_ptr.vmem [resolvable:$true] %s2710
          %2713 = dma.vmem_to_hbm [thread:$0]  %s2711, 256, %s2708, %s2694
        $region52: #{tpu_custom_call.1} parent=47 // pred_fallthru
          _
      $region48: #{tpu_custom_call.1} parent=5 // pred_fallthru
        _
      %p2714 = scmp.le.s32.totalorder 2, %s16
      // Predicated region
      $region53: #{tpu_custom_call.1} parent=5 // pred_check
        %p2715 = pneg %p2714
      $region54: #{tpu_custom_call.1} parent=5 // pred_check_branch
        %2717 = sbr.rel (%p2715) target = $region56
      $region55: #{tpu_custom_call.1} parent=5 // pred_region
        %s2718 = ssub.s32 %s16, 2
        // Predicated region
        $region57: #{tpu_custom_call.1} parent=55 // pred_check
          %p2719 = pneg %p213
        $region58: #{tpu_custom_call.1} parent=55 // pred_check_branch
          %2721 = sbr.rel (%p2719) target = $region60
        $region59: #{tpu_custom_call.1} parent=55 // pred_region
          %s2722 = sand.u32 %s198, 1
          %s2723 = scalar_lea.sflag [#allocation3], %s2722
          %s2724 = sand.u32 %s198, 1
          %s2725 = smul.addr %s2724, 16
          %s2726 = scalar_lea.vmem [#allocation2], %s2725
          %2727 = dma.done %s2723, 256
        $region60: #{tpu_custom_call.1} parent=55 // pred_fallthru
          _
      $region56: #{tpu_custom_call.1} parent=5 // pred_fallthru
        _
    $region6: #{tpu_custom_call.1} parent=1 // loop_footer
      %s20 = sadd.s32 1, %s16
    $region7: #{tpu_custom_call.1} parent=1 // loop_footer_branch
      %15 = sbr.rel target = $region3
    $region8: #{tpu_custom_call.1} parent=1 // loop_exit
      _
    %2728 = vsyncpa [#allocation3], 1
    %s2729 = scalar_lea.sflag [#allocation3], 1
    %2730 = vsyncpa %s2729, 1

</llo_original>
